<compile_context>
chip_gen: v6e
topology: v6e:2x2x1
jax: 0.10.0
libtpu: 0.0.40
codegen_flags: <defaults>
</compile_context>

<pallas_src>
import functools
import math

import jax
import jax.numpy as jnp
import numpy as np
from jax import lax
from jax.experimental import pallas as pl
from jax.experimental.pallas import tpu as pltpu


def _attn_kernel(x_ref, mask_ref, wqkv_ref, bqkv_ref, wo_ref, bo_ref, *out_refs,
                 seq_len, vis):
    """One (batch, head) grid step.

    x_ref:     (S_pad, H)        bf16  hidden states for this batch element
    mask_ref:  (1, S_pad)        f32   additive key mask {0, -1e30}
    wqkv_ref:  (nh, H, 3*d)      bf16  fused per-head Q|K|V weights (VMEM resident)
    bqkv_ref:  (nh, 1, 3*d)      f32   fused per-head Q|K|V biases  (VMEM resident)
    wo_ref:    (nh, d, H)        bf16  per-head output-projection rows (resident)
    bo_ref:    (1, H)            f32   output-projection bias (resident)
    out_ref:   (1, S_pad, H)           resident across the head axis; accumulated
    probs_ref: (1, 1, S_pad, S_pad) f32 softmax probs (only when vis=True)
    """
    if vis:
        out_ref, probs_ref = out_refs
    else:
        out_ref, = out_refs
        probs_ref = None

    h = pl.program_id(1)

    x = x_ref[...]                                              # (S_pad, H) bf16

    # Fused QKV projection for this head: a single MXU pass with N = 3*d
    # (lane-denser than three N = d matmuls).  Head selection is a leading-axis
    # address offset on the resident weight slab -- no relayout.
    qkv = jnp.dot(x, wqkv_ref[h], preferred_element_type=jnp.float32)
    qkv = (qkv + bqkv_ref[h]).astype(jnp.bfloat16)              # (S_pad, 3*d)

    d = qkv.shape[-1] // 3
    q = qkv[:, 0:d]            # 1/sqrt(d) already folded into W_q / b_q
    k = qkv[:, d:2 * d]
    v = qkv[:, 2 * d:3 * d]

    # scores = q @ k^T, contracting the last dims (no transpose materialised);
    # bf16 operands, f32 accumulation.
    s = lax.dot_general(q, k, (((1,), (1,)), ((), ())),
                        preferred_element_type=jnp.float32)     # (S_pad, S_pad)

    if seq_len != s.shape[-1]:   # static: only emitted when the wrapper padded S
        s = s + mask_ref[...]    # additive key-pad mask, single VALU add

    # Numerically-stable softmax, kept in f32 on the VPU/EUP path (v5e has no
    # bf16 VPU); the denominator reciprocal goes to the EUP slot.
    s = s - jnp.max(s, axis=-1, keepdims=True)
    e = jnp.exp(s)
    p = e * pl.reciprocal(jnp.sum(e, axis=-1, keepdims=True), approx=True)

    if vis:
        # TODO(synk): storing probs in bf16 would halve the dominant HBM write
        # when vis=True; kept f32 here to preserve the module's output dtype.
        probs_ref[0, 0] = p

    ctx = jnp.dot(p.astype(jnp.bfloat16), v,
                  preferred_element_type=jnp.float32)           # (S_pad, d)
    contrib = jnp.dot(ctx.astype(jnp.bfloat16), wo_ref[h],
                      preferred_element_type=jnp.float32)       # (S_pad, H)

    # Accumulate directly into the resident output block (no scratch, no
    # zero-fill, no final copy).
    @pl.when(h == 0)
    def _():
        out_ref[0] = contrib.astype(out_ref.dtype)

    @pl.when(h != 0)
    def _():
        out_ref[0] = (out_ref[0].astype(jnp.float32) + contrib).astype(out_ref.dtype)

    @pl.when(h == pl.num_programs(1) - 1)
    def _():
        out_ref[0] = (out_ref[0].astype(jnp.float32) + bo_ref[...]).astype(out_ref.dtype)


def attention_forward(hidden_states, params, num_heads, vis=True):
    """Fused multi-head attention via Pallas.

    hidden_states: (B, S, H) float32
    params: dict with wq,bq,wk,bk,wv,bv,wo,bo ; weights stored [in, out]
    returns: (attention_output (B,S,H), weights (B,nh,S,S) if vis else None)
    """
    B, S, H = hidden_states.shape
    assert H % num_heads == 0
    d = H // num_heads
    scale = 1.0 / math.sqrt(d)

    # Pad S to a multiple of 128 for lane-dense (S,S)/(S,H) tiles & stores.
    S_pad = ((S + 127) // 128) * 128
    x = hidden_states
    if S_pad != S:
        x = jnp.pad(x, ((0, 0), (0, S_pad - S), (0, 0)))
    x = x.astype(jnp.bfloat16)          # MXU-native operand; halves x DMA bytes

    # Additive key mask row: 0 for real keys, -1e30 for padded keys (no -inf/NaN
    # edge cases, one add instead of iota/compare/where in the kernel).
    key_mask = jnp.where(jnp.arange(S_pad) < S, 0.0, -1e30)
    key_mask = key_mask.astype(jnp.float32).reshape(1, S_pad)

    # Pack per-head weight/bias slabs in the wrapper (layout plumbing, done once).
    # 1/sqrt(d) is folded into the Q weights/bias here (weight-side preprocessing).
    def per_head_cols(w):   # (H, H) -> (nh, H, d)
        return w.reshape(H, num_heads, d).transpose(1, 0, 2)

    w_qkv = jnp.concatenate(
        [per_head_cols(params["wq"] * scale),
         per_head_cols(params["wk"]),
         per_head_cols(params["wv"])], axis=-1).astype(jnp.bfloat16)      # (nh, H, 3d)
    b_qkv = jnp.concatenate(
        [(params["bq"] * scale).reshape(num_heads, 1, d),
         params["bk"].reshape(num_heads, 1, d),
         params["bv"].reshape(num_heads, 1, d)], axis=-1).astype(jnp.float32)  # (nh,1,3d)
    w_out = params["wo"].reshape(num_heads, d, H).astype(jnp.bfloat16)    # (nh, d, H)
    b_out = params["bo"].reshape(1, H).astype(jnp.float32)

    kernel = functools.partial(_attn_kernel, seq_len=S, vis=vis)

    # Constant index maps keep the weight/bias slabs VMEM-resident: the pipeline
    # only issues a copy when a block index changes, so they are fetched from HBM
    # exactly once for the whole (B, num_heads) grid.
    in_specs = [
        pl.BlockSpec((pl.Squeezed(), S_pad, H), lambda b, h: (b, 0, 0)),      # x
        pl.BlockSpec((1, S_pad), lambda b, h: (0, 0)),                        # key mask
        pl.BlockSpec((num_heads, H, 3 * d), lambda b, h: (0, 0, 0)),          # w_qkv
        pl.BlockSpec((num_heads, 1, 3 * d), lambda b, h: (0, 0, 0)),          # b_qkv
        pl.BlockSpec((num_heads, d, H), lambda b, h: (0, 0, 0)),              # w_out
        pl.BlockSpec((1, H), lambda b, h: (0, 0)),                            # b_out
    ]

    out_shape = [jax.ShapeDtypeStruct((B, S_pad, H), hidden_states.dtype)]
    out_specs = [pl.BlockSpec((1, S_pad, H), lambda b, h: (b, 0, 0))]
    if vis:
        out_shape.append(
            jax.ShapeDtypeStruct((B, num_heads, S_pad, S_pad), jnp.float32))
        out_specs.append(
            pl.BlockSpec((1, 1, S_pad, S_pad), lambda b, h: (b, h, 0, 0)))

    # Explicit VMEM budget (scoped default: 16 MiB on v5e, 32 MiB on v6e/v7x).
    weight_bytes = (w_qkv.size + w_out.size) * 2 + (b_qkv.size + b_out.size) * 4
    block_bytes = S_pad * H * (2 + 4) + (S_pad * S_pad * 4 if vis else 0)
    vmem_need = 2 * (weight_bytes + block_bytes)        # double-buffered worst case
    vmem_limit = int(min(max(4 * vmem_need, 32 * 1024 * 1024), 64 * 1024 * 1024))

    # Advisory cost estimate: weights counted once (they really are fetched once).
    flops = 8 * B * S_pad * H * H + 4 * B * S_pad * S_pad * H
    transcendentals = B * num_heads * S_pad * (S_pad + 1)
    bytes_accessed = (B * S_pad * H * 2          # x (bf16 read)
                      + B * S_pad * H * 4        # out (f32 write)
                      + weight_bytes + S_pad * 4
                      + (B * num_heads * S_pad * S_pad * 4 if vis else 0))

    results = pl.pallas_call(
        kernel,
        out_shape=tuple(out_shape),
        grid=(B, num_heads),
        in_specs=in_specs,
        out_specs=tuple(out_specs),
        compiler_params=pltpu.CompilerParams(
            dimension_semantics=("parallel", "arbitrary"),
            vmem_limit_bytes=vmem_limit),
        cost_estimate=pl.CostEstimate(flops=flops,
                                      transcendentals=transcendentals,
                                      bytes_accessed=bytes_accessed),
    )(x, key_mask, w_qkv, b_qkv, w_out, b_out)

    out = results[0][:, :S, :]
    probs = results[1][:, :, :S, :S] if vis else None
    return out, probs


def _reference(hidden_states, params, num_heads):
    """Plain-JAX (f32) reference mirroring the PyTorch forward (eval mode)."""
    B, S, H = hidden_states.shape
    d = H // num_heads

    def lin(x, w, b):
        return x @ w + b

    q = lin(hidden_states, params["wq"], params["bq"])
    k = lin(hidden_states, params["wk"], params["bk"])
    v = lin(hidden_states, params["wv"], params["bv"])

    def split(t):  # (B,S,H) -> (B,nh,S,d)
        return t.reshape(B, S, num_heads, d).transpose(0, 2, 1, 3)

    q, k, v = split(q), split(k), split(v)
    scores = jnp.einsum("bhqd,bhkd->bhqk", q, k) / math.sqrt(d)
    probs = jax.nn.softmax(scores, axis=-1)
    ctx = jnp.einsum("bhqk,bhkd->bhqd", probs, v)
    ctx = ctx.transpose(0, 2, 1, 3).reshape(B, S, H)
    out = lin(ctx, params["wo"], params["bo"])
    return out, probs


if __name__ == "__main__":
    # Small config consistent with the module: hidden=32, num_heads=4, seq=8, batch=2
    B, S, H, NH = 2, 8, 32, 4

    key = jax.random.PRNGKey(0)
    keys = jax.random.split(key, 9)
    x = jax.random.normal(keys[0], (B, S, H), dtype=jnp.float32)

    def init_linear(kw, kb, fan_in, fan_out):
        bound = 1.0 / math.sqrt(fan_in)
        w = jax.random.uniform(kw, (fan_in, fan_out), jnp.float32, -bound, bound)
        b = jax.random.uniform(kb, (fan_out,), jnp.float32, -bound, bound)
        return w, b

    wq, bq = init_linear(keys[1], keys[2], H, H)
    wk, bk = init_linear(keys[3], keys[4], H, H)
    wv, bv = init_linear(keys[5], keys[6], H, H)
    wo, bo = init_linear(keys[7], keys[8], H, H)
    params = dict(wq=wq, bq=bq, wk=wk, bk=bk, wv=wv, bv=bv, wo=wo, bo=bo)

    ref_out, ref_weights = _reference(x, params, NH)

    # bf16 MXU operands (perf review item 1) -> tolerance relaxed from 1e-5.
    RTOL = ATOL = 4e-2

    # vis=True path (returns attention probs, like the module with vis=True)
    out, weights = attention_forward(x, params, NH, vis=True)
    out = jax.block_until_ready(out)
    weights = jax.block_until_ready(weights)
    np.testing.assert_allclose(np.asarray(out), np.asarray(ref_out),
                               rtol=RTOL, atol=ATOL)
    np.testing.assert_allclose(np.asarray(weights), np.asarray(ref_weights),
                               rtol=RTOL, atol=ATOL)

    # vis=False path (no probs HBM write at all)
    out2, weights2 = attention_forward(x, params, NH, vis=False)
    out2 = jax.block_until_ready(out2)
    assert weights2 is None
    np.testing.assert_allclose(np.asarray(out2), np.asarray(ref_out),
                               rtol=RTOL, atol=ATOL)

    print("KERNEL_OK")
</pallas_src>

<mosaic_0001>
module attributes {stable_mosaic.version = 11 : i64} {
  func.func @_attn_kernel(%arg0: i32, %arg1: i32, %arg2: memref<1x128x32xbf16, #tpu.memory_space<vmem>>, %arg3: memref<1x128xf32, #tpu.memory_space<vmem>>, %arg4: memref<4x32x24xbf16, #tpu.memory_space<vmem>>, %arg5: memref<4x1x24xf32, #tpu.memory_space<vmem>>, %arg6: memref<4x8x32xbf16, #tpu.memory_space<vmem>>, %arg7: memref<1x32xf32, #tpu.memory_space<vmem>>, %arg8: memref<1x128x32xf32, #tpu.memory_space<vmem>>, %arg9: memref<1x1x128x128xf32, #tpu.memory_space<vmem>>) attributes {dimension_semantics = [#tpu.dimension_semantics<parallel>, #tpu.dimension_semantics<arbitrary>], iteration_bounds = array<i64: 2, 4>, scalar_prefetch = 0 : i64, scratch_operands = 0 : i64, tpu.core_type = #tpu.core_type<tc>, window_params = [{transform_indices = @transform_0, window_bounds = array<i64: 1, 128, 32>}, {pipeline_mode = #tpu.pipeline_mode<synchronous>, transform_indices = @transform_1, window_bounds = array<i64: 1, 128>}, {pipeline_mode = #tpu.pipeline_mode<synchronous>, transform_indices = @transform_2, window_bounds = array<i64: 4, 32, 24>}, {pipeline_mode = #tpu.pipeline_mode<synchronous>, transform_indices = @transform_3, window_bounds = array<i64: 4, 1, 24>}, {pipeline_mode = #tpu.pipeline_mode<synchronous>, transform_indices = @transform_4, window_bounds = array<i64: 4, 8, 32>}, {pipeline_mode = #tpu.pipeline_mode<synchronous>, transform_indices = @transform_5, window_bounds = array<i64: 1, 32>}, {transform_indices = @transform_6, window_bounds = array<i64: 1, 128, 32>}, {transform_indices = @transform_7, window_bounds = array<i64: 1, 1, 128, 128>}]} {
    %c0 = arith.constant 0 : index
    %c0_0 = arith.constant 0 : index
    %c0_1 = arith.constant 0 : index
    %0 = vector.load %arg2[%c0, %c0_0, %c0_1] : memref<1x128x32xbf16, #tpu.memory_space<vmem>>, vector<1x128x32xbf16>
    %1 = vector.shape_cast %0 : vector<1x128x32xbf16> to vector<128x32xbf16>
    %2 = arith.index_cast %arg1 : i32 to index
    %c0_2 = arith.constant 0 : index
    %c0_3 = arith.constant 0 : index
    %3 = vector.load %arg4[%2, %c0_2, %c0_3] : memref<4x32x24xbf16, #tpu.memory_space<vmem>>, vector<1x32x24xbf16>
    %4 = vector.shape_cast %3 : vector<1x32x24xbf16> to vector<32x24xbf16>
    %cst = arith.constant dense<0.000000e+00> : vector<128x24xf32>
    %5 = tpu.matmul %1, %4, %cst {dimension_numbers = #tpu.dot_dimension_numbers<[1], [0], [0], [1], [0, 0, 1, 1], [], []>} : vector<128x32xbf16>, vector<32x24xbf16>, vector<128x24xf32> -> vector<128x24xf32>
    %6 = arith.index_cast %arg1 : i32 to index
    %c0_4 = arith.constant 0 : index
    %c0_5 = arith.constant 0 : index
    %7 = vector.load %arg5[%6, %c0_4, %c0_5] : memref<4x1x24xf32, #tpu.memory_space<vmem>>, vector<1x1x24xf32>
    %8 = vector.shape_cast %7 : vector<1x1x24xf32> to vector<1x24xf32>
    %9 = vector.broadcast %8 : vector<1x24xf32> to vector<128x24xf32>
    %10 = arith.addf %5, %9 : vector<128x24xf32>
    %11 = arith.truncf %10 : vector<128x24xf32> to vector<128x24xbf16>
    %12 = vector.extract_strided_slice %11 {offsets = [0, 0], sizes = [128, 8], strides = [1, 1]} : vector<128x24xbf16> to vector<128x8xbf16>
    %13 = vector.extract_strided_slice %11 {offsets = [0, 8], sizes = [128, 8], strides = [1, 1]} : vector<128x24xbf16> to vector<128x8xbf16>
    %14 = vector.extract_strided_slice %11 {offsets = [0, 16], sizes = [128, 8], strides = [1, 1]} : vector<128x24xbf16> to vector<128x8xbf16>
    %cst_6 = arith.constant dense<0.000000e+00> : vector<128x128xf32>
    %15 = tpu.matmul %12, %13, %cst_6 {dimension_numbers = #tpu.dot_dimension_numbers<[1], [1], [0], [0], [0, 0, 1, 0], [], []>} : vector<128x8xbf16>, vector<128x8xbf16>, vector<128x128xf32> -> vector<128x128xf32>
    %c0_7 = arith.constant 0 : index
    %c0_8 = arith.constant 0 : index
    %16 = vector.load %arg3[%c0_7, %c0_8] : memref<1x128xf32, #tpu.memory_space<vmem>>, vector<1x128xf32>
    %17 = vector.broadcast %16 : vector<1x128xf32> to vector<128x128xf32>
    %18 = arith.addf %15, %17 : vector<128x128xf32>
    %cst_9 = arith.constant dense<0xFF800000> : vector<128xf32>
    %19 = vector.multi_reduction <maximumf>, %18, %cst_9 [1] : vector<128x128xf32> to vector<128xf32>
    %20 = vector.shape_cast %19 : vector<128xf32> to vector<128x1xf32>
    %21 = vector.broadcast %20 : vector<128x1xf32> to vector<128x128xf32>
    %22 = arith.subf %18, %21 : vector<128x128xf32>
    %23 = math.exp %22 : vector<128x128xf32>
    %cst_10 = arith.constant dense<0.000000e+00> : vector<128xf32>
    %24 = vector.multi_reduction <add>, %23, %cst_10 [1] : vector<128x128xf32> to vector<128xf32>
    %25 = vector.shape_cast %24 : vector<128xf32> to vector<128x1xf32>
    %26 = tpu.reciprocal %25 {approx = true} : vector<128x1xf32> -> vector<128x1xf32>
    %27 = vector.broadcast %26 : vector<128x1xf32> to vector<128x128xf32>
    %28 = arith.mulf %23, %27 : vector<128x128xf32>
    %c0_11 = arith.constant 0 : index
    %c0_12 = arith.constant 0 : index
    %c0_13 = arith.constant 0 : index
    %c0_14 = arith.constant 0 : index
    %29 = vector.load %arg9[%c0_11, %c0_12, %c0_13, %c0_14] : memref<1x1x128x128xf32, #tpu.memory_space<vmem>>, vector<1x1x128x128xf32>
    %30 = vector.shape_cast %29 : vector<1x1x128x128xf32> to vector<128x128xf32>
    %31 = vector.shape_cast %28 : vector<128x128xf32> to vector<1x1x128x128xf32>
    tpu.vector_store %arg9[%c0_11, %c0_12, %c0_13, %c0_14], %31 {strides = array<i32>} : memref<1x1x128x128xf32, #tpu.memory_space<vmem>>, vector<1x1x128x128xf32>,
    %32 = arith.truncf %28 : vector<128x128xf32> to vector<128x128xbf16>
    %cst_15 = arith.constant dense<0.000000e+00> : vector<128x8xf32>
    %33 = tpu.matmul %32, %14, %cst_15 {dimension_numbers = #tpu.dot_dimension_numbers<[1], [0], [0], [1], [0, 0, 1, 1], [], []>} : vector<128x128xbf16>, vector<128x8xbf16>, vector<128x8xf32> -> vector<128x8xf32>
    %34 = arith.truncf %33 : vector<128x8xf32> to vector<128x8xbf16>
    %35 = arith.index_cast %arg1 : i32 to index
    %c0_16 = arith.constant 0 : index
    %c0_17 = arith.constant 0 : index
    %36 = vector.load %arg6[%35, %c0_16, %c0_17] : memref<4x8x32xbf16, #tpu.memory_space<vmem>>, vector<1x8x32xbf16>
    %37 = vector.shape_cast %36 : vector<1x8x32xbf16> to vector<8x32xbf16>
    %cst_18 = arith.constant dense<0.000000e+00> : vector<128x32xf32>
    %38 = tpu.matmul %34, %37, %cst_18 {dimension_numbers = #tpu.dot_dimension_numbers<[1], [0], [0], [1], [0, 0, 1, 1], [], []>} : vector<128x8xbf16>, vector<8x32xbf16>, vector<128x32xf32> -> vector<128x32xf32>
    %c0_i32 = arith.constant 0 : i32
    %39 = arith.cmpi eq, %arg1, %c0_i32 : i32
    %40 = arith.extui %39 : i1 to i32
    %c0_i32_19 = arith.constant 0 : i32
    %41 = arith.cmpi ne, %40, %c0_i32_19 : i32
    scf.if %41 {
      %c0_23 = arith.constant 0 : index
      %c0_24 = arith.constant 0 : index
      %c0_25 = arith.constant 0 : index
      %48 = vector.load %arg8[%c0_23, %c0_24, %c0_25] : memref<1x128x32xf32, #tpu.memory_space<vmem>>, vector<1x128x32xf32>
      %49 = vector.shape_cast %48 : vector<1x128x32xf32> to vector<128x32xf32>
      %50 = vector.shape_cast %38 : vector<128x32xf32> to vector<1x128x32xf32>
      tpu.vector_store %arg8[%c0_23, %c0_24, %c0_25], %50 {strides = array<i32>} : memref<1x128x32xf32, #tpu.memory_space<vmem>>, vector<1x128x32xf32>,
    } else {
    }
    %c0_i32_20 = arith.constant 0 : i32
    %42 = arith.cmpi ne, %arg1, %c0_i32_20 : i32
    %43 = arith.extui %42 : i1 to i32
    %c0_i32_21 = arith.constant 0 : i32
    %44 = arith.cmpi ne, %43, %c0_i32_21 : i32
    scf.if %44 {
      %c0_23 = arith.constant 0 : index
      %c0_24 = arith.constant 0 : index
      %c0_25 = arith.constant 0 : index
      %48 = vector.load %arg8[%c0_23, %c0_24, %c0_25] : memref<1x128x32xf32, #tpu.memory_space<vmem>>, vector<1x128x32xf32>
      %49 = vector.shape_cast %48 : vector<1x128x32xf32> to vector<128x32xf32>
      %50 = arith.addf %49, %38 : vector<128x32xf32>
      %c0_26 = arith.constant 0 : index
      %c0_27 = arith.constant 0 : index
      %c0_28 = arith.constant 0 : index
      %51 = vector.load %arg8[%c0_26, %c0_27, %c0_28] : memref<1x128x32xf32, #tpu.memory_space<vmem>>, vector<1x128x32xf32>
      %52 = vector.shape_cast %51 : vector<1x128x32xf32> to vector<128x32xf32>
      %53 = vector.shape_cast %50 : vector<128x32xf32> to vector<1x128x32xf32>
      tpu.vector_store %arg8[%c0_26, %c0_27, %c0_28], %53 {strides = array<i32>} : memref<1x128x32xf32, #tpu.memory_space<vmem>>, vector<1x128x32xf32>,
    } else {
    }
    %c3_i32 = arith.constant 3 : i32
    %45 = arith.cmpi eq, %arg1, %c3_i32 : i32
    %46 = arith.extui %45 : i1 to i32
    %c0_i32_22 = arith.constant 0 : i32
    %47 = arith.cmpi ne, %46, %c0_i32_22 : i32
    scf.if %47 {
      %c0_23 = arith.constant 0 : index
      %c0_24 = arith.constant 0 : index
      %c0_25 = arith.constant 0 : index
      %48 = vector.load %arg8[%c0_23, %c0_24, %c0_25] : memref<1x128x32xf32, #tpu.memory_space<vmem>>, vector<1x128x32xf32>
      %49 = vector.shape_cast %48 : vector<1x128x32xf32> to vector<128x32xf32>
      %c0_26 = arith.constant 0 : index
      %c0_27 = arith.constant 0 : index
      %50 = vector.load %arg7[%c0_26, %c0_27] : memref<1x32xf32, #tpu.memory_space<vmem>>, vector<1x32xf32>
      %51 = vector.broadcast %50 : vector<1x32xf32> to vector<128x32xf32>
      %52 = arith.addf %49, %51 : vector<128x32xf32>
      %c0_28 = arith.constant 0 : index
      %c0_29 = arith.constant 0 : index
      %c0_30 = arith.constant 0 : index
      %53 = vector.load %arg8[%c0_28, %c0_29, %c0_30] : memref<1x128x32xf32, #tpu.memory_space<vmem>>, vector<1x128x32xf32>
      %54 = vector.shape_cast %53 : vector<1x128x32xf32> to vector<128x32xf32>
      %55 = vector.shape_cast %52 : vector<128x32xf32> to vector<1x128x32xf32>
      tpu.vector_store %arg8[%c0_28, %c0_29, %c0_30], %55 {strides = array<i32>} : memref<1x128x32xf32, #tpu.memory_space<vmem>>, vector<1x128x32xf32>,
    } else {
    }
    return
  }
  func.func @transform_0(%arg0: i32, %arg1: i32) -> (i32, i32, i32) {
    %c0_i32 = arith.constant 0 : i32
    %c0_i32_0 = arith.constant 0 : i32
    %c0_i32_1 = arith.constant 0 : i32
    return %arg0, %c0_i32, %c0_i32_0 : i32, i32, i32
  }
  func.func @transform_1(%arg0: i32, %arg1: i32) -> (i32, i32) {
    %c0_i32 = arith.constant 0 : i32
    %c0_i32_0 = arith.constant 0 : i32
    %c0_i32_1 = arith.constant 0 : i32
    return %c0_i32, %c0_i32_0 : i32, i32
  }
  func.func @transform_2(%arg0: i32, %arg1: i32) -> (i32, i32, i32) {
    %c0_i32 = arith.constant 0 : i32
    %c0_i32_0 = arith.constant 0 : i32
    %c0_i32_1 = arith.constant 0 : i32
    %c0_i32_2 = arith.constant 0 : i32
    return %c0_i32, %c0_i32_0, %c0_i32_1 : i32, i32, i32
  }
  func.func @transform_3(%arg0: i32, %arg1: i32) -> (i32, i32, i32) {
    %c0_i32 = arith.constant 0 : i32
    %c0_i32_0 = arith.constant 0 : i32
    %c0_i32_1 = arith.constant 0 : i32
    %c0_i32_2 = arith.constant 0 : i32
    return %c0_i32, %c0_i32_0, %c0_i32_1 : i32, i32, i32
  }
  func.func @transform_4(%arg0: i32, %arg1: i32) -> (i32, i32, i32) {
    %c0_i32 = arith.constant 0 : i32
    %c0_i32_0 = arith.constant 0 : i32
    %c0_i32_1 = arith.constant 0 : i32
    %c0_i32_2 = arith.constant 0 : i32
    return %c0_i32, %c0_i32_0, %c0_i32_1 : i32, i32, i32
  }
  func.func @transform_5(%arg0: i32, %arg1: i32) -> (i32, i32) {
    %c0_i32 = arith.constant 0 : i32
    %c0_i32_0 = arith.constant 0 : i32
    %c0_i32_1 = arith.constant 0 : i32
    return %c0_i32, %c0_i32_0 : i32, i32
  }
  func.func @transform_6(%arg0: i32, %arg1: i32) -> (i32, i32, i32) {
    %c0_i32 = arith.constant 0 : i32
    %c0_i32_0 = arith.constant 0 : i32
    %c0_i32_1 = arith.constant 0 : i32
    return %arg0, %c0_i32, %c0_i32_0 : i32, i32, i32
  }
  func.func @transform_7(%arg0: i32, %arg1: i32) -> (i32, i32, i32, i32) {
    %c0_i32 = arith.constant 0 : i32
    %c0_i32_0 = arith.constant 0 : i32
    %c0_i32_1 = arith.constant 0 : i32
    return %arg0, %arg1, %c0_i32, %c0_i32_0 : i32, i32, i32, i32
  }
}

</mosaic_0001>

<llo_original>
// kernel: tpu_custom_call.1
$region0: #{tpu_custom_call.1}
  #allocation0 [shape = 'u32[]', space=smem, size = 0x4, offset = 0x4, fixed_abs, tag = 'smem constant byte address 0x4 - core index']
  #allocation1 [shape = 'u32[144,128]{1,0:T(1,128)}', space=vmem, size = 0x12000, scoped, tag = 'internal scratch']
  %s0 = inlined_call_operand.vmem [shape: bf16[2,128,32], index: 0, kind: input, shape index: {}]
  %s1 = inlined_call_operand.vmem [shape: f32[1,128], index: 1, kind: input, shape index: {}]
  %s2 = inlined_call_operand.vmem [shape: bf16[4,32,24], index: 2, kind: input, shape index: {}]
  %s3 = inlined_call_operand.vmem [shape: f32[4,1,24], index: 3, kind: input, shape index: {}]
  %s4 = inlined_call_operand.vmem [shape: bf16[4,8,32], index: 4, kind: input, shape index: {}]
  %s5 = inlined_call_operand.vmem [shape: f32[1,32], index: 5, kind: input, shape index: {}]
  %s6 = inlined_call_operand.vmem [shape: f32[2,128,32], index: 6, kind: output, shape index: {0}]
  %s7 = inlined_call_operand.hbm [shape: f32[2,4,128,128], index: 7, kind: output, shape index: {1}]
  %8 = xla_tuple %s6, %s7
  %s9 = sld [smem:[#allocation0]]
  $region77: #{tpu_custom_call.1} parent=0
    _
  %s11 = ssub.s32 1, %s9
  %s12 = scalar_select 0, %s11, %s9
  $region1: #{tpu_custom_call.1} parent=0
    #allocation2 [shape = 'u8[131072]{0}', space=vmem, size = 0x20000, scoped, tag = 'output window, operand 1']
    #allocation3 [shape = 's32[2]{0}', space=sflag, size = 0x8, scoped, tag = 'scoped memory for tpu_custom_call.1']
    %13 = vsyncpa [#allocation3], 0
    %s14 = scalar_lea.sflag [#allocation3], 1
    %15 = vsyncpa %s14, 0
    loop: start=0, step=1, limit=10
    $region2: #{tpu_custom_call.1} parent=1 // loop_pre_header
      _
    $region3: #{tpu_custom_call.1} parent=1 // loop_header
      %s17 = sphi 0, %s21
      %p18 = scmp.ge.s32.totalorder %s17, 10
      %s24 = sphi 0, %s36
      %s25 = sphi 0, %s32
      %s26 = sphi 0, %s24
      %s27 = sphi 0, %s25
      %s28 = sphi 0, %s26
      %s29 = sphi 0, %s27
      %s39 = sphi 0, %s41
      %s42 = sphi 0, %s39
      %s43 = sphi 0, %s42
      %s59 = sphi 0, %s43
      %s63 = sphi 0, %s63
      %s65 = sphi 0, %s63
      %s66 = sphi 0, %s65
      %s80 = sphi 0, %s66
      %s84 = sphi 0, %s84
      %s86 = sphi 0, %s84
      %s87 = sphi 0, %s86
      %s101 = sphi 0, %s87
      %s105 = sphi 0, %s105
      %s107 = sphi 0, %s105
      %s108 = sphi 0, %s107
      %s122 = sphi 0, %s108
      %s126 = sphi 0, %s126
      %s128 = sphi 0, %s126
      %s129 = sphi 0, %s128
      %s143 = sphi 0, %s129
      %s147 = sphi 0, %s147
      %s149 = sphi 0, %s147
      %s150 = sphi 0, %s149
      %s164 = sphi 0, %s150
      %s170 = sphi 0, %s172
      %s173 = sphi 0, %s170
      %s174 = sphi 0, %s173
      %s190 = sphi 0, %s174
      %s198 = sphi 0, %s200
      %s201 = sphi 0, %s198
      %s202 = sphi 0, %s201
      %s218 = sphi 0, %s202
    $region4: #{tpu_custom_call.1} parent=1 // loop_header_branch
      %20 = sbr.rel (%p18) target = $region8
    $region5: #{tpu_custom_call.1} parent=1 // loop_body
      %s22 = ssub.s32 %s17, 1
      %s23 = ssub.s32 %s17, 2
      %s30 = sadd.s32 1, %s25
      %p31 = scmp.ge.s32.totalorder %s30, 4
      %s32 = scalar_select %p31, 0, %s30
      %s33 = sadd.s32 1, %s24
      %s34 = scalar_select %p31, %s33, %s24
      %p35 = scmp.ge.s32.totalorder %s34, 2
      %s36 = scalar_select %p35, 0, %s34
      %s37 = ssub.s32 %s24, %s36
      %p38 = scmp.eq.s32.totalorder %s37, 0
      %s40 = sadd.s32 %s39, 1
      %s41 = scalar_select %p38, %s39, %s40
      %p44 = pneg %p38
      %p45 = scmp.eq.s32.totalorder %s17, 7
      %p46 = por %p44, %p45
      %p47 = scmp.ne.s32.totalorder %s39, %s42
      %p48 = scmp.eq.s32.totalorder %s17, 0
      %p49 = por %p47, %p48
      %p50 = scmp.ne.s32.totalorder %s39, %s42
      %p51 = scmp.eq.s32.totalorder %s22, 7
      %p52 = por %p50, %p51
      %p53 = scmp.ne.s32.totalorder %s42, %s43
      %p54 = scmp.eq.s32.totalorder %s22, 0
      %p55 = por %p53, %p54
      %p56 = scmp.ne.s32.totalorder %s42, %s43
      %p57 = scmp.eq.s32.totalorder %s23, 7
      %p58 = por %p56, %p57
      %p60 = scmp.ne.s32.totalorder %s43, %s59
      %p61 = scmp.eq.s32.totalorder %s23, 0
      %p62 = por %p60, %p61
      %s64 = sadd.s32 %s63, 1
      %p67 = scmp.eq.s32.totalorder %s17, 7
      %p68 = scmp.ne.s32.totalorder %s63, %s65
      %p69 = scmp.eq.s32.totalorder %s17, 0
      %p70 = por %p68, %p69
      %p71 = scmp.ne.s32.totalorder %s63, %s65
      %p72 = scmp.eq.s32.totalorder %s22, 7
      %p73 = por %p71, %p72
      %p74 = scmp.ne.s32.totalorder %s65, %s66
      %p75 = scmp.eq.s32.totalorder %s22, 0
      %p76 = por %p74, %p75
      %p77 = scmp.ne.s32.totalorder %s65, %s66
      %p78 = scmp.eq.s32.totalorder %s23, 7
      %p79 = por %p77, %p78
      %p81 = scmp.ne.s32.totalorder %s66, %s80
      %p82 = scmp.eq.s32.totalorder %s23, 0
      %p83 = por %p81, %p82
      %s85 = sadd.s32 %s84, 1
      %p88 = scmp.eq.s32.totalorder %s17, 7
      %p89 = scmp.ne.s32.totalorder %s84, %s86
      %p90 = scmp.eq.s32.totalorder %s17, 0
      %p91 = por %p89, %p90
      %p92 = scmp.ne.s32.totalorder %s84, %s86
      %p93 = scmp.eq.s32.totalorder %s22, 7
      %p94 = por %p92, %p93
      %p95 = scmp.ne.s32.totalorder %s86, %s87
      %p96 = scmp.eq.s32.totalorder %s22, 0
      %p97 = por %p95, %p96
      %p98 = scmp.ne.s32.totalorder %s86, %s87
      %p99 = scmp.eq.s32.totalorder %s23, 7
      %p100 = por %p98, %p99
      %p102 = scmp.ne.s32.totalorder %s87, %s101
      %p103 = scmp.eq.s32.totalorder %s23, 0
      %p104 = por %p102, %p103
      %s106 = sadd.s32 %s105, 1
      %p109 = scmp.eq.s32.totalorder %s17, 7
      %p110 = scmp.ne.s32.totalorder %s105, %s107
      %p111 = scmp.eq.s32.totalorder %s17, 0
      %p112 = por %p110, %p111
      %p113 = scmp.ne.s32.totalorder %s105, %s107
      %p114 = scmp.eq.s32.totalorder %s22, 7
      %p115 = por %p113, %p114
      %p116 = scmp.ne.s32.totalorder %s107, %s108
      %p117 = scmp.eq.s32.totalorder %s22, 0
      %p118 = por %p116, %p117
      %p119 = scmp.ne.s32.totalorder %s107, %s108
      %p120 = scmp.eq.s32.totalorder %s23, 7
      %p121 = por %p119, %p120
      %p123 = scmp.ne.s32.totalorder %s108, %s122
      %p124 = scmp.eq.s32.totalorder %s23, 0
      %p125 = por %p123, %p124
      %s127 = sadd.s32 %s126, 1
      %p130 = scmp.eq.s32.totalorder %s17, 7
      %p131 = scmp.ne.s32.totalorder %s126, %s128
      %p132 = scmp.eq.s32.totalorder %s17, 0
      %p133 = por %p131, %p132
      %p134 = scmp.ne.s32.totalorder %s126, %s128
      %p135 = scmp.eq.s32.totalorder %s22, 7
      %p136 = por %p134, %p135
      %p137 = scmp.ne.s32.totalorder %s128, %s129
      %p138 = scmp.eq.s32.totalorder %s22, 0
      %p139 = por %p137, %p138
      %p140 = scmp.ne.s32.totalorder %s128, %s129
      %p141 = scmp.eq.s32.totalorder %s23, 7
      %p142 = por %p140, %p141
      %p144 = scmp.ne.s32.totalorder %s129, %s143
      %p145 = scmp.eq.s32.totalorder %s23, 0
      %p146 = por %p144, %p145
      %s148 = sadd.s32 %s147, 1
      %p151 = scmp.eq.s32.totalorder %s17, 7
      %p152 = scmp.ne.s32.totalorder %s147, %s149
      %p153 = scmp.eq.s32.totalorder %s17, 0
      %p154 = por %p152, %p153
      %p155 = scmp.ne.s32.totalorder %s147, %s149
      %p156 = scmp.eq.s32.totalorder %s22, 7
      %p157 = por %p155, %p156
      %p158 = scmp.ne.s32.totalorder %s149, %s150
      %p159 = scmp.eq.s32.totalorder %s22, 0
      %p160 = por %p158, %p159
      %p161 = scmp.ne.s32.totalorder %s149, %s150
      %p162 = scmp.eq.s32.totalorder %s23, 7
      %p163 = por %p161, %p162
      %p165 = scmp.ne.s32.totalorder %s150, %s164
      %p166 = scmp.eq.s32.totalorder %s23, 0
      %p167 = por %p165, %p166
      %s168 = ssub.s32 %s24, %s36
      %p169 = scmp.eq.s32.totalorder %s168, 0
      %s171 = sadd.s32 %s170, 1
      %s172 = scalar_select %p169, %s170, %s171
      %p175 = pneg %p169
      %p176 = scmp.eq.s32.totalorder %s17, 7
      %p177 = por %p175, %p176
      %p178 = scmp.ne.s32.totalorder %s170, %s173
      %p179 = scmp.eq.s32.totalorder %s17, 0
      %p180 = por %p178, %p179
      %p181 = scmp.ne.s32.totalorder %s170, %s173
      %p182 = scmp.eq.s32.totalorder %s22, 7
      %p183 = por %p181, %p182
      %p184 = scmp.ne.s32.totalorder %s173, %s174
      %p185 = scmp.eq.s32.totalorder %s22, 0
      %p186 = por %p184, %p185
      %p187 = scmp.ne.s32.totalorder %s173, %s174
      %p188 = scmp.eq.s32.totalorder %s23, 7
      %p189 = por %p187, %p188
      %p191 = scmp.ne.s32.totalorder %s174, %s190
      %p192 = scmp.eq.s32.totalorder %s23, 0
      %p193 = por %p191, %p192
      %s194 = ssub.s32 %s24, %s36
      %s195 = ssub.s32 %s25, %s32
      %s196 = sor.u32 %s194, %s195
      %p197 = scmp.eq.s32.totalorder %s196, 0
      %s199 = sadd.s32 %s198, 1
      %s200 = scalar_select %p197, %s198, %s199
      %p203 = pneg %p197
      %p204 = scmp.eq.s32.totalorder %s17, 7
      %p205 = por %p203, %p204
      %p206 = scmp.ne.s32.totalorder %s198, %s201
      %p207 = scmp.eq.s32.totalorder %s17, 0
      %p208 = por %p206, %p207
      %p209 = scmp.ne.s32.totalorder %s198, %s201
      %p210 = scmp.eq.s32.totalorder %s22, 7
      %p211 = por %p209, %p210
      %p212 = scmp.ne.s32.totalorder %s201, %s202
      %p213 = scmp.eq.s32.totalorder %s22, 0
      %p214 = por %p212, %p213
      %p215 = scmp.ne.s32.totalorder %s201, %s202
      %p216 = scmp.eq.s32.totalorder %s23, 7
      %p217 = por %p215, %p216
      %p219 = scmp.ne.s32.totalorder %s202, %s218
      %p220 = scmp.eq.s32.totalorder %s23, 0
      %p221 = por %p219, %p220
      %p222 = scmp.le.s32.totalorder 1, %s17
      %p223 = scmp.lt.s32.totalorder %s17, 9
      %p224 = pnand %p222, %p223
      %p225 = pneg %p224
      // Predicated region
      $region9: #{tpu_custom_call.1} parent=5 // pred_check
        _
      $region10: #{tpu_custom_call.1} parent=5 // pred_check_branch
        %227 = sbr.rel (%p224) target = $region12
      $region11: #{tpu_custom_call.1} parent=5 // pred_region
        %s228 = ssub.s32 %s17, 1
        // Predicated region
        $region13: #{tpu_custom_call.1} parent=11 // pred_check
          %p229 = pneg %p76
        $region14: #{tpu_custom_call.1} parent=11 // pred_check_branch
          %231 = sbr.rel (%p229) target = $region16
        $region15: #{tpu_custom_call.1} parent=11 // pred_region
          _
        $region16: #{tpu_custom_call.1} parent=11 // pred_fallthru
          _
        // Predicated region
        $region17: #{tpu_custom_call.1} parent=11 // pred_check
          %p232 = pneg %p97
        $region18: #{tpu_custom_call.1} parent=11 // pred_check_branch
          %234 = sbr.rel (%p232) target = $region20
        $region19: #{tpu_custom_call.1} parent=11 // pred_region
          _
        $region20: #{tpu_custom_call.1} parent=11 // pred_fallthru
          _
        // Predicated region
        $region21: #{tpu_custom_call.1} parent=11 // pred_check
          %p235 = pneg %p118
        $region22: #{tpu_custom_call.1} parent=11 // pred_check_branch
          %237 = sbr.rel (%p235) target = $region24
        $region23: #{tpu_custom_call.1} parent=11 // pred_region
          _
        $region24: #{tpu_custom_call.1} parent=11 // pred_fallthru
          _
        // Predicated region
        $region25: #{tpu_custom_call.1} parent=11 // pred_check
          %p238 = pneg %p139
        $region26: #{tpu_custom_call.1} parent=11 // pred_check_branch
          %240 = sbr.rel (%p238) target = $region28
        $region27: #{tpu_custom_call.1} parent=11 // pred_region
          _
        $region28: #{tpu_custom_call.1} parent=11 // pred_fallthru
          _
        // Predicated region
        $region29: #{tpu_custom_call.1} parent=11 // pred_check
          %p241 = pneg %p160
        $region30: #{tpu_custom_call.1} parent=11 // pred_check_branch
          %243 = sbr.rel (%p241) target = $region32
        $region31: #{tpu_custom_call.1} parent=11 // pred_region
          _
        $region32: #{tpu_custom_call.1} parent=11 // pred_fallthru
          _
      $region12: #{tpu_custom_call.1} parent=5 // pred_fallthru
        _
      %p244 = scmp.lt.s32.totalorder %s17, 8
      // Predicated region
      $region33: #{tpu_custom_call.1} parent=5 // pred_check
        %p245 = pneg %p244
      $region34: #{tpu_custom_call.1} parent=5 // pred_check_branch
        %247 = sbr.rel (%p245) target = $region36
      $region35: #{tpu_custom_call.1} parent=5 // pred_region
        // Predicated region
        $region37: #{tpu_custom_call.1} parent=35 // pred_check
          %p248 = pneg %p49
        $region38: #{tpu_custom_call.1} parent=35 // pred_check_branch
          %250 = sbr.rel (%p248) target = $region40
        $region39: #{tpu_custom_call.1} parent=35 // pred_region
          %p251 = scmp.lt.s32.totalorder %s24, 1
          %s252 = scalar_select %p251, %s24, 1
          %s253 = smul.addr %s252, 16
          %s254 = smul.addr %s253, 4
          %s255 = scalar_lea.vmem %s0, %s254
        $region40: #{tpu_custom_call.1} parent=35 // pred_fallthru
          _
      $region36: #{tpu_custom_call.1} parent=5 // pred_fallthru
        _
      %p256 = scmp.le.s32.totalorder 1, %s17
      %p257 = scmp.lt.s32.totalorder %s17, 9
      %p258 = pnand %p256, %p257
      %p259 = pneg %p258
      // Predicated region
      $region41: #{tpu_custom_call.1} parent=5 // pred_check
        _
      $region42: #{tpu_custom_call.1} parent=5 // pred_check_branch
        %261 = sbr.rel (%p258) target = $region44
      $region43: #{tpu_custom_call.1} parent=5 // pred_region
        %s262 = ssub.s32 %s17, 1
        %p263 = scmp.lt.s32.totalorder %s26, 1
        %s264 = scalar_select %p263, %s26, 1
        %s265 = smul.addr %s264, 16
        %s266 = smul.addr %s265, 4
        %s267 = scalar_lea.vmem %s0, %s266
        %p268 = pneg %p55
        %p269 = pneg %p52
        %p270 = pneg %p76
        %p271 = pneg %p73
        %p272 = pneg %p97
        %p273 = pneg %p94
        %p274 = pneg %p118
        %p275 = pneg %p115
        %p276 = pneg %p139
        %p277 = pneg %p136
        %p278 = pneg %p160
        %p279 = pneg %p157
        %p280 = pneg %p186
        %p281 = pneg %p183
        %p282 = scmp.lt.s32.totalorder %s26, 1
        %s283 = scalar_select %p282, %s26, 1
        %s284 = smul.addr %s283, 16
        %s285 = smul.addr %s284, 8
        %s286 = scalar_lea.vmem %s6, %s285
        %p287 = pneg %p214
        %p288 = pneg %p211
        %s289 = sand.u32 %s201, 1
        %s290 = scalar_lea.sflag [#allocation3], %s289
        %s291 = sand.u32 %s201, 1
        %s292 = smul.addr %s291, 128
        %s293 = scalar_lea.vmem [#allocation2], %s292
        %p294 = scmp.lt.s32.totalorder %s26, 1
        %s295 = scalar_select %p294, %s26, 1
        %s296 = smul.addr %s295, 16
        %s297 = smul.addr %s296, 4
        %s298 = scalar_lea.vmem %s0, %s297
        %p299 = scmp.lt.s32.totalorder %s26, 1
        %s300 = scalar_select %p299, %s26, 1
        %s301 = smul.addr %s300, 16
        %s302 = smul.addr %s301, 8
        %s303 = scalar_lea.vmem %s6, %s302
        %v305 = vld [vmem:[%s298] sm:$0xf]
        %v306 = vld [vmem:[%s298 + $0x4] sm:$0xf]
        %v307 = vld [vmem:[%s298 + $0x8] sm:$0xf]
        %v308 = vld [vmem:[%s298 + $0xc] sm:$0xf]
        %v309 = vld [vmem:[%s298 + $0x10] sm:$0xf]
        %v310 = vld [vmem:[%s298 + $0x14] sm:$0xf]
        %v311 = vld [vmem:[%s298 + $0x18] sm:$0xf]
        %v312 = vld [vmem:[%s298 + $0x1c] sm:$0xf]
        %v313 = vld [vmem:[%s298 + $0x20] sm:$0xf]
        %v314 = vld [vmem:[%s298 + $0x24] sm:$0xf]
        %v315 = vld [vmem:[%s298 + $0x28] sm:$0xf]
        %v316 = vld [vmem:[%s298 + $0x2c] sm:$0xf]
        %v317 = vld [vmem:[%s298 + $0x30] sm:$0xf]
        %v318 = vld [vmem:[%s298 + $0x34] sm:$0xf]
        %v319 = vld [vmem:[%s298 + $0x38] sm:$0xf]
        %v320 = vld [vmem:[%s298 + $0x3c] sm:$0xf]
        %s321 = smul.u32 %s27, 4
        %s322 = smul.addr %s321, 4
        %s323 = scalar_lea.vmem %s2, %s322
        %v324 = vld [vmem:[%s323] sm:$0xf]
        %v325 = vld [vmem:[%s323 + $0x4] sm:$0xf]
        %v326 = vld [vmem:[%s323 + $0x8] sm:$0xf]
        %v327 = vld [vmem:[%s323 + $0xc] sm:$0xf]
        %s328 = scalar_lea.vmem %s3, %s27
        %v329 = vld [vmem:[%s328] sm:$0x1]
        %v331 = vlaneseq
        %v332 = vshrl.u32 %v331, 7
        %v333 = vsub.s32 0, %v332
        %v334 = vrot.slane %v329, %v333
        %v352 = vunpack.c.l.b16 %v305
        %v353 = vunpack.c.l.b16 %v306
        %v354 = vunpack.c.l.b16 %v307
        %v355 = vunpack.c.l.b16 %v308
        %v356 = vunpack.c.l.b16 %v309
        %v357 = vunpack.c.l.b16 %v310
        %v358 = vunpack.c.l.b16 %v311
        %v359 = vunpack.c.l.b16 %v312
        %v360 = vunpack.c.l.b16 %v313
        %v361 = vunpack.c.l.b16 %v314
        %v362 = vunpack.c.l.b16 %v315
        %v363 = vunpack.c.l.b16 %v316
        %v364 = vunpack.c.l.b16 %v317
        %v365 = vunpack.c.l.b16 %v318
        %v366 = vunpack.c.l.b16 %v319
        %v367 = vunpack.c.l.b16 %v320
        %v368 = vpack.c.b16 %v353, %v352
        %v369 = vpack.c.b16 %v355, %v354
        %v370 = vpack.c.b16 %v357, %v356
        %v371 = vpack.c.b16 %v359, %v358
        %v372 = vpack.c.b16 %v361, %v360
        %v373 = vpack.c.b16 %v363, %v362
        %v374 = vpack.c.b16 %v365, %v364
        %v375 = vpack.c.b16 %v367, %v366
        %v380 = vunpack.c.l.b16 %v324
        %v381 = vunpack.c.l.b16 %v325
        %v382 = vunpack.c.l.b16 %v326
        %v383 = vunpack.c.l.b16 %v327
        %v384 = vpack.c.b16 %v381, %v380
        %v385 = vpack.c.b16 %v383, %v382
        %vm388 = vcmask 261120
        %v390 = vsel %vm388, %v368, 0
        %v393 = vsel %vm388, %v369, 0
        %v396 = vsel %vm388, %v370, 0
        %v399 = vsel %vm388, %v371, 0
        %v402 = vsel %vm388, %v372, 0
        %v405 = vsel %vm388, %v373, 0
        %v408 = vsel %vm388, %v374, 0
        %v411 = vsel %vm388, %v375, 0
        %413 = vmatprep.subr.bf16.mxu0 0
        %414 = vmatpush1.bf16.msra.mxu0 0
        %415 = vmatprep.subr.bf16.mxu0 0
        %416 = vmatpush1.bf16.msra.mxu0 0
        %417 = vmatprep.subr.bf16.mxu0 0
        %418 = vmatpush1.bf16.msra.mxu0 0
        %419 = vmatprep.subr.bf16.mxu0 0
        %420 = vmatpush1.bf16.msra.mxu0 0
        %421 = vmatprep.subr.bf16.mxu0 0
        %422 = vmatpush1.bf16.msra.mxu0 0
        %423 = vmatprep.subr.bf16.mxu0 0
        %424 = vmatpush1.bf16.msra.mxu0 0
        %425 = vmatprep.subr.bf16.mxu0 0
        %426 = vmatpush1.bf16.msra.mxu0 %v385
        %427 = vmatprep.subr.bf16.mxu0 0
        %428 = vmatpush1.bf16.msra.mxu0 %v384
        %429 = vmatprep.subr.bf16.mxu0 0
        %430 = vmatpush2.bf16.msra.mxu0 0
        %431 = vmatprep.subr.bf16.mxu0 0
        %432 = vmatpush2.bf16.msra.mxu0 0
        %433 = vmatprep.subr.bf16.mxu0 0
        %434 = vmatpush2.bf16.msra.mxu0 0
        %435 = vmatprep.subr.bf16.mxu0 0
        %436 = vmatpush2.bf16.msra.mxu0 0
        %437 = vmatprep.subr.bf16.mxu0 0
        %438 = vmatpush2.bf16.msra.mxu0 0
        %439 = vmatprep.subr.bf16.mxu0 0
        %440 = vmatpush2.bf16.msra.mxu0 0
        %441 = vmatprep.subr.bf16.mxu0 0
        %442 = vmatpush2.bf16.msra.mxu0 0
        %443 = vmatprep.subr.bf16.mxu0 0
        %444 = vmatpush2.bf16.msra.mxu0 0
        %445 = vmatprep.mubr.bf16.mxu0 0
        %446 = vmatmul.mubr.bf16.gmra.mxu0 %v390
        %v447 = vpop.f32.mrf.mxu0
        %v448 = vadd.f32 %v334, %v447
        %v449 = vpop.f32.mrf.mxu0
        %v450 = vpop.f32.mrf.mxu0
        %v451 = vadd.f32 %v334, %v450
        %v452 = vpop.f32.mrf.mxu0
        %453 = vmatprep.mubr.bf16.mxu0 0
        %454 = vmatmul.mubr.bf16.gmra.mxu0 %v393
        %v455 = vpop.f32.mrf.mxu0
        %v456 = vadd.f32 %v334, %v455
        %v457 = vpop.f32.mrf.mxu0
        %v458 = vpop.f32.mrf.mxu0
        %v459 = vadd.f32 %v334, %v458
        %v460 = vpop.f32.mrf.mxu0
        %461 = vmatprep.mubr.bf16.mxu0 0
        %462 = vmatmul.mubr.bf16.gmra.mxu0 %v396
        %v463 = vpop.f32.mrf.mxu0
        %v464 = vadd.f32 %v334, %v463
        %v465 = vpop.f32.mrf.mxu0
        %v466 = vpop.f32.mrf.mxu0
        %v467 = vadd.f32 %v334, %v466
        %v468 = vpop.f32.mrf.mxu0
        %469 = vmatprep.mubr.bf16.mxu0 0
        %470 = vmatmul.mubr.bf16.gmra.mxu0 %v399
        %v471 = vpop.f32.mrf.mxu0
        %v472 = vadd.f32 %v334, %v471
        %v473 = vpop.f32.mrf.mxu0
        %v474 = vpop.f32.mrf.mxu0
        %v475 = vadd.f32 %v334, %v474
        %v476 = vpop.f32.mrf.mxu0
        %477 = vmatprep.mubr.bf16.mxu0 0
        %478 = vmatmul.mubr.bf16.gmra.mxu0 %v402
        %v479 = vpop.f32.mrf.mxu0
        %v480 = vadd.f32 %v334, %v479
        %v481 = vpop.f32.mrf.mxu0
        %v482 = vpop.f32.mrf.mxu0
        %v483 = vadd.f32 %v334, %v482
        %v484 = vpop.f32.mrf.mxu0
        %485 = vmatprep.mubr.bf16.mxu0 0
        %486 = vmatmul.mubr.bf16.gmra.mxu0 %v405
        %v487 = vpop.f32.mrf.mxu0
        %v488 = vadd.f32 %v334, %v487
        %v489 = vpop.f32.mrf.mxu0
        %v490 = vpop.f32.mrf.mxu0
        %v491 = vadd.f32 %v334, %v490
        %v492 = vpop.f32.mrf.mxu0
        %493 = vmatprep.mubr.bf16.mxu0 0
        %494 = vmatmul.mubr.bf16.gmra.mxu0 %v408
        %v495 = vpop.f32.mrf.mxu0
        %v496 = vadd.f32 %v334, %v495
        %v497 = vpop.f32.mrf.mxu0
        %v498 = vpop.f32.mrf.mxu0
        %v499 = vadd.f32 %v334, %v498
        %v500 = vpop.f32.mrf.mxu0
        %501 = vmatprep.mubr.bf16.mxu0 0
        %502 = vmatmul.mubr.bf16.gmra.mxu0 %v411
        %v503 = vpop.f32.mrf.mxu0
        %v504 = vadd.f32 %v334, %v503
        %v505 = vpop.f32.mrf.mxu0
        %v506 = vpop.f32.mrf.mxu0
        %v507 = vadd.f32 %v334, %v506
        %v508 = vpop.f32.mrf.mxu0
        %509 = vdwg.mxu0
        %v510 = vpack.c.bf16 %v451, %v448
        %v511 = vpack.c.bf16 %v459, %v456
        %v512 = vpack.c.bf16 %v467, %v464
        %v513 = vpack.c.bf16 %v475, %v472
        %v514 = vpack.c.bf16 %v483, %v480
        %v515 = vpack.c.bf16 %v491, %v488
        %v516 = vpack.c.bf16 %v499, %v496
        %v517 = vpack.c.bf16 %v507, %v504
        %v518 = vld [vmem:[%s1] sm:$0x1]
        %v520 = vlaneseq
        %v521 = vshrl.u32 %v520, 7
        %v522 = vsub.s32 0, %v521
        %v523 = vrot.slane %v518, %v522
        %533 = vrot.lane.b32.xlu0 %v510, 120
        %v534 = vpop.permute.xlu0 %533
        %535 = vrot.lane.b32.xlu0 %v511, 120
        %v536 = vpop.permute.xlu0 %535
        %537 = vrot.lane.b32.xlu0 %v512, 120
        %v538 = vpop.permute.xlu0 %537
        %539 = vrot.lane.b32.xlu0 %v513, 120
        %v540 = vpop.permute.xlu0 %539
        %541 = vrot.lane.b32.xlu0 %v514, 120
        %v542 = vpop.permute.xlu0 %541
        %543 = vrot.lane.b32.xlu0 %v515, 120
        %v544 = vpop.permute.xlu0 %543
        %545 = vrot.lane.b32.xlu0 %v516, 120
        %v546 = vpop.permute.xlu0 %545
        %547 = vrot.lane.b32.xlu0 %v517, 120
        %v548 = vpop.permute.xlu0 %547
        %vm549 = vcmask 64512
        %v551 = vsel %vm549, %v510, 0
        %v554 = vsel %vm549, %v511, 0
        %v557 = vsel %vm549, %v512, 0
        %v560 = vsel %vm549, %v513, 0
        %v563 = vsel %vm549, %v514, 0
        %v566 = vsel %vm549, %v515, 0
        %v569 = vsel %vm549, %v516, 0
        %v572 = vsel %vm549, %v517, 0
        %v575 = vsel %vm549, %v534, 0
        %v578 = vsel %vm549, %v536, 0
        %v581 = vsel %vm549, %v538, 0
        %v584 = vsel %vm549, %v540, 0
        %v587 = vsel %vm549, %v542, 0
        %v590 = vsel %vm549, %v544, 0
        %v593 = vsel %vm549, %v546, 0
        %v596 = vsel %vm549, %v548, 0
        %598 = vmatprep.subr.bf16.mxu0 0
        %599 = vmatpush1.bf16.xpose.msra.mxu0 %v596
        %600 = vmatprep.subr.bf16.mxu0 0
        %601 = vmatpush1.bf16.xpose.msra.mxu0 %v593
        %602 = vmatprep.subr.bf16.mxu0 0
        %603 = vmatpush1.bf16.xpose.msra.mxu0 %v590
        %604 = vmatprep.subr.bf16.mxu0 0
        %605 = vmatpush1.bf16.xpose.msra.mxu0 %v587
        %606 = vmatprep.subr.bf16.mxu0 0
        %607 = vmatpush1.bf16.xpose.msra.mxu0 %v584
        %608 = vmatprep.subr.bf16.mxu0 0
        %609 = vmatpush1.bf16.xpose.msra.mxu0 %v581
        %610 = vmatprep.subr.bf16.mxu0 0
        %611 = vmatpush1.bf16.xpose.msra.mxu0 %v578
        %612 = vmatprep.subr.bf16.mxu0 0
        %613 = vmatpush1.bf16.xpose.msra.mxu0 %v575
        %614 = vmatprep.subr.bf16.mxu0 0
        %615 = vmatpush2.bf16.xpose.msra.mxu0 0
        %616 = vmatprep.subr.bf16.mxu0 0
        %617 = vmatpush2.bf16.xpose.msra.mxu0 0
        %618 = vmatprep.subr.bf16.mxu0 0
        %619 = vmatpush2.bf16.xpose.msra.mxu0 0
        %620 = vmatprep.subr.bf16.mxu0 0
        %621 = vmatpush2.bf16.xpose.msra.mxu0 0
        %622 = vmatprep.subr.bf16.mxu0 0
        %623 = vmatpush2.bf16.xpose.msra.mxu0 0
        %624 = vmatprep.subr.bf16.mxu0 0
        %625 = vmatpush2.bf16.xpose.msra.mxu0 0
        %626 = vmatprep.subr.bf16.mxu0 0
        %627 = vmatpush2.bf16.xpose.msra.mxu0 0
        %628 = vmatprep.subr.bf16.mxu0 0
        %629 = vmatpush2.bf16.xpose.msra.mxu0 0
        %630 = vmatprep.mubr.bf16.mxu0 0
        %631 = vmatmul.mubr.bf16.gmra.mxu0 %v551
        %v632 = vpop.f32.mrf.mxu0
        %v633 = vadd.f32 %v523, %v632
        %v634 = vpop.f32.mrf.mxu0
        %v635 = vpop.f32.mrf.mxu0
        %v636 = vadd.f32 %v523, %v635
        %v637 = vpop.f32.mrf.mxu0
        %638 = vmatprep.mubr.bf16.mxu0 0
        %639 = vmatmul.mubr.bf16.gmra.mxu0 %v554
        %v640 = vpop.f32.mrf.mxu0
        %v641 = vadd.f32 %v523, %v640
        %v642 = vpop.f32.mrf.mxu0
        %v643 = vpop.f32.mrf.mxu0
        %v644 = vadd.f32 %v523, %v643
        %v645 = vpop.f32.mrf.mxu0
        %646 = vmatprep.mubr.bf16.mxu0 0
        %647 = vmatmul.mubr.bf16.gmra.mxu0 %v557
        %v648 = vpop.f32.mrf.mxu0
        %v649 = vadd.f32 %v523, %v648
        %v650 = vpop.f32.mrf.mxu0
        %v651 = vpop.f32.mrf.mxu0
        %v652 = vadd.f32 %v523, %v651
        %v653 = vpop.f32.mrf.mxu0
        %654 = vmatprep.mubr.bf16.mxu0 0
        %655 = vmatmul.mubr.bf16.gmra.mxu0 %v560
        %v656 = vpop.f32.mrf.mxu0
        %v657 = vadd.f32 %v523, %v656
        %v658 = vpop.f32.mrf.mxu0
        %v659 = vpop.f32.mrf.mxu0
        %v660 = vadd.f32 %v523, %v659
        %v661 = vpop.f32.mrf.mxu0
        %662 = vmatprep.mubr.bf16.mxu0 0
        %663 = vmatmul.mubr.bf16.gmra.mxu0 %v563
        %v664 = vpop.f32.mrf.mxu0
        %v665 = vadd.f32 %v523, %v664
        %v666 = vpop.f32.mrf.mxu0
        %v667 = vpop.f32.mrf.mxu0
        %v668 = vadd.f32 %v523, %v667
        %v669 = vpop.f32.mrf.mxu0
        %670 = vmatprep.mubr.bf16.mxu0 0
        %671 = vmatmul.mubr.bf16.gmra.mxu0 %v566
        %v672 = vpop.f32.mrf.mxu0
        %v673 = vadd.f32 %v523, %v672
        %v674 = vpop.f32.mrf.mxu0
        %v675 = vpop.f32.mrf.mxu0
        %v676 = vadd.f32 %v523, %v675
        %v677 = vpop.f32.mrf.mxu0
        %678 = vmatprep.mubr.bf16.mxu0 0
        %679 = vmatmul.mubr.bf16.gmra.mxu0 %v569
        %v680 = vpop.f32.mrf.mxu0
        %v681 = vadd.f32 %v523, %v680
        %v682 = vpop.f32.mrf.mxu0
        %v683 = vpop.f32.mrf.mxu0
        %v684 = vadd.f32 %v523, %v683
        %v685 = vpop.f32.mrf.mxu0
        %686 = vmatprep.mubr.bf16.mxu0 0
        %687 = vmatmul.mubr.bf16.gmra.mxu0 %v572
        %v688 = vpop.f32.mrf.mxu0
        %v689 = vadd.f32 %v523, %v688
        %v690 = vpop.f32.mrf.mxu0
        %v691 = vpop.f32.mrf.mxu0
        %v692 = vadd.f32 %v523, %v691
        %v693 = vpop.f32.mrf.mxu0
        %694 = vdwg.mxu0
        %695 = vmax.xlane.f32.xlu0 %v633
        %v696 = vpop.xlane.xlu0 %695
        %697 = vmax.xlane.f32.xlu0 %v636
        %v698 = vpop.xlane.xlu0 %697
        %699 = vmax.xlane.f32.xlu0 %v641
        %v700 = vpop.xlane.xlu0 %699
        %701 = vmax.xlane.f32.xlu0 %v644
        %v702 = vpop.xlane.xlu0 %701
        %703 = vmax.xlane.f32.xlu0 %v649
        %v704 = vpop.xlane.xlu0 %703
        %705 = vmax.xlane.f32.xlu0 %v652
        %v706 = vpop.xlane.xlu0 %705
        %707 = vmax.xlane.f32.xlu0 %v657
        %v708 = vpop.xlane.xlu0 %707
        %709 = vmax.xlane.f32.xlu0 %v660
        %v710 = vpop.xlane.xlu0 %709
        %711 = vmax.xlane.f32.xlu0 %v665
        %v712 = vpop.xlane.xlu0 %711
        %713 = vmax.xlane.f32.xlu0 %v668
        %v714 = vpop.xlane.xlu0 %713
        %715 = vmax.xlane.f32.xlu0 %v673
        %v716 = vpop.xlane.xlu0 %715
        %717 = vmax.xlane.f32.xlu0 %v676
        %v718 = vpop.xlane.xlu0 %717
        %719 = vmax.xlane.f32.xlu0 %v681
        %v720 = vpop.xlane.xlu0 %719
        %721 = vmax.xlane.f32.xlu0 %v684
        %v722 = vpop.xlane.xlu0 %721
        %723 = vmax.xlane.f32.xlu0 %v689
        %v724 = vpop.xlane.xlu0 %723
        %725 = vmax.xlane.f32.xlu0 %v692
        %v726 = vpop.xlane.xlu0 %725
        %v727 = vsub.f32 %v633, %v696
        %v728 = vsub.f32 %v636, %v698
        %v729 = vsub.f32 %v641, %v700
        %v730 = vsub.f32 %v644, %v702
        %v731 = vsub.f32 %v649, %v704
        %v732 = vsub.f32 %v652, %v706
        %v733 = vsub.f32 %v657, %v708
        %v734 = vsub.f32 %v660, %v710
        %v735 = vsub.f32 %v665, %v712
        %v736 = vsub.f32 %v668, %v714
        %v737 = vsub.f32 %v673, %v716
        %v738 = vsub.f32 %v676, %v718
        %v739 = vsub.f32 %v681, %v720
        %v740 = vsub.f32 %v684, %v722
        %v741 = vsub.f32 %v689, %v724
        %v742 = vsub.f32 %v692, %v726
        %v743 = vmul.f32 %v727, 1.442695
        %v744 = vpow.pop %v743
        %v745 = vmul.f32 %v728, 1.442695
        %v746 = vpow.pop %v745
        %v747 = vmul.f32 %v729, 1.442695
        %v748 = vpow.pop %v747
        %v749 = vmul.f32 %v730, 1.442695
        %v750 = vpow.pop %v749
        %v751 = vmul.f32 %v731, 1.442695
        %v752 = vpow.pop %v751
        %v753 = vmul.f32 %v732, 1.442695
        %v754 = vpow.pop %v753
        %v755 = vmul.f32 %v733, 1.442695
        %v756 = vpow.pop %v755
        %v757 = vmul.f32 %v734, 1.442695
        %v758 = vpow.pop %v757
        %v759 = vmul.f32 %v735, 1.442695
        %v760 = vpow.pop %v759
        %v761 = vmul.f32 %v736, 1.442695
        %v762 = vpow.pop %v761
        %v763 = vmul.f32 %v737, 1.442695
        %v764 = vpow.pop %v763
        %v765 = vmul.f32 %v738, 1.442695
        %v766 = vpow.pop %v765
        %v767 = vmul.f32 %v739, 1.442695
        %v768 = vpow.pop %v767
        %v769 = vmul.f32 %v740, 1.442695
        %v770 = vpow.pop %v769
        %v771 = vmul.f32 %v741, 1.442695
        %v772 = vpow.pop %v771
        %v773 = vmul.f32 %v742, 1.442695
        %v774 = vpow.pop %v773
        %775 = vadd.xlane.f32.xlu0 %v744
        %v776 = vpop.xlane.xlu0 %775
        %777 = vadd.xlane.f32.xlu0 %v746
        %v778 = vpop.xlane.xlu0 %777
        %779 = vadd.xlane.f32.xlu0 %v748
        %v780 = vpop.xlane.xlu0 %779
        %781 = vadd.xlane.f32.xlu0 %v750
        %v782 = vpop.xlane.xlu0 %781
        %783 = vadd.xlane.f32.xlu0 %v752
        %v784 = vpop.xlane.xlu0 %783
        %785 = vadd.xlane.f32.xlu0 %v754
        %v786 = vpop.xlane.xlu0 %785
        %787 = vadd.xlane.f32.xlu0 %v756
        %v788 = vpop.xlane.xlu0 %787
        %789 = vadd.xlane.f32.xlu0 %v758
        %v790 = vpop.xlane.xlu0 %789
        %791 = vadd.xlane.f32.xlu0 %v760
        %v792 = vpop.xlane.xlu0 %791
        %793 = vadd.xlane.f32.xlu0 %v762
        %v794 = vpop.xlane.xlu0 %793
        %795 = vadd.xlane.f32.xlu0 %v764
        %v796 = vpop.xlane.xlu0 %795
        %797 = vadd.xlane.f32.xlu0 %v766
        %v798 = vpop.xlane.xlu0 %797
        %799 = vadd.xlane.f32.xlu0 %v768
        %v800 = vpop.xlane.xlu0 %799
        %801 = vadd.xlane.f32.xlu0 %v770
        %v802 = vpop.xlane.xlu0 %801
        %803 = vadd.xlane.f32.xlu0 %v772
        %v804 = vpop.xlane.xlu0 %803
        %805 = vadd.xlane.f32.xlu0 %v774
        %v806 = vpop.xlane.xlu0 %805
        %v807 = vrcp.pop %v776
        %v808 = vrcp.pop %v778
        %v809 = vrcp.pop %v780
        %v810 = vrcp.pop %v782
        %v811 = vrcp.pop %v784
        %v812 = vrcp.pop %v786
        %v813 = vrcp.pop %v788
        %v814 = vrcp.pop %v790
        %v815 = vrcp.pop %v792
        %v816 = vrcp.pop %v794
        %v817 = vrcp.pop %v796
        %v818 = vrcp.pop %v798
        %v819 = vrcp.pop %v800
        %v820 = vrcp.pop %v802
        %v821 = vrcp.pop %v804
        %v822 = vrcp.pop %v806
        %v823 = vmul.f32 %v744, %v807
        %v824 = vmul.f32 %v746, %v808
        %v825 = vmul.f32 %v748, %v809
        %v826 = vmul.f32 %v750, %v810
        %v827 = vmul.f32 %v752, %v811
        %v828 = vmul.f32 %v754, %v812
        %v829 = vmul.f32 %v756, %v813
        %v830 = vmul.f32 %v758, %v814
        %v831 = vmul.f32 %v760, %v815
        %v832 = vmul.f32 %v762, %v816
        %v833 = vmul.f32 %v764, %v817
        %v834 = vmul.f32 %v766, %v818
        %v835 = vmul.f32 %v768, %v819
        %v836 = vmul.f32 %v770, %v820
        %v837 = vmul.f32 %v772, %v821
        %v838 = vmul.f32 %v774, %v822
        %839 = vst [vmem:[%s293] sm:$0xff] %v823
        %840 = vst [vmem:[%s293 + $0x8] sm:$0xff] %v824
        %841 = vst [vmem:[%s293 + $0x10] sm:$0xff] %v825
        %842 = vst [vmem:[%s293 + $0x18] sm:$0xff] %v826
        %843 = vst [vmem:[%s293 + $0x20] sm:$0xff] %v827
        %844 = vst [vmem:[%s293 + $0x28] sm:$0xff] %v828
        %845 = vst [vmem:[%s293 + $0x30] sm:$0xff] %v829
        %846 = vst [vmem:[%s293 + $0x38] sm:$0xff] %v830
        %847 = vst [vmem:[%s293 + $0x40] sm:$0xff] %v831
        %848 = vst [vmem:[%s293 + $0x48] sm:$0xff] %v832
        %849 = vst [vmem:[%s293 + $0x50] sm:$0xff] %v833
        %850 = vst [vmem:[%s293 + $0x58] sm:$0xff] %v834
        %851 = vst [vmem:[%s293 + $0x60] sm:$0xff] %v835
        %852 = vst [vmem:[%s293 + $0x68] sm:$0xff] %v836
        %853 = vst [vmem:[%s293 + $0x70] sm:$0xff] %v837
        %854 = vst [vmem:[%s293 + $0x78] sm:$0xff] %v838
        %v855 = vpack.c.bf16 %v824, %v823
        %v856 = vpack.c.bf16 %v826, %v825
        %v857 = vpack.c.bf16 %v828, %v827
        %v858 = vpack.c.bf16 %v830, %v829
        %v859 = vpack.c.bf16 %v832, %v831
        %v860 = vpack.c.bf16 %v834, %v833
        %v861 = vpack.c.bf16 %v836, %v835
        %v862 = vpack.c.bf16 %v838, %v837
        %863 = vrot.lane.b32.xlu0 %v510, 112
        %v864 = vpop.permute.xlu0 %863
        %865 = vrot.lane.b32.xlu0 %v511, 112
        %v866 = vpop.permute.xlu0 %865
        %867 = vrot.lane.b32.xlu0 %v512, 112
        %v868 = vpop.permute.xlu0 %867
        %869 = vrot.lane.b32.xlu0 %v513, 112
        %v870 = vpop.permute.xlu0 %869
        %871 = vrot.lane.b32.xlu0 %v514, 112
        %v872 = vpop.permute.xlu0 %871
        %873 = vrot.lane.b32.xlu0 %v515, 112
        %v874 = vpop.permute.xlu0 %873
        %875 = vrot.lane.b32.xlu0 %v516, 112
        %v876 = vpop.permute.xlu0 %875
        %877 = vrot.lane.b32.xlu0 %v517, 112
        %v878 = vpop.permute.xlu0 %877
        %887 = vmatprep.subr.bf16.mxu0 0
        %888 = vmatpush1.bf16.msra.mxu0 %v878
        %889 = vmatprep.subr.bf16.mxu0 0
        %890 = vmatpush1.bf16.msra.mxu0 %v876
        %891 = vmatprep.subr.bf16.mxu0 0
        %892 = vmatpush1.bf16.msra.mxu0 %v874
        %893 = vmatprep.subr.bf16.mxu0 0
        %894 = vmatpush1.bf16.msra.mxu0 %v872
        %895 = vmatprep.subr.bf16.mxu0 0
        %896 = vmatpush1.bf16.msra.mxu0 %v870
        %897 = vmatprep.subr.bf16.mxu0 0
        %898 = vmatpush1.bf16.msra.mxu0 %v868
        %899 = vmatprep.subr.bf16.mxu0 0
        %900 = vmatpush1.bf16.msra.mxu0 %v866
        %901 = vmatprep.subr.bf16.mxu0 0
        %902 = vmatpush1.bf16.msra.mxu0 %v864
        %903 = vmatprep.subr.bf16.mxu0 0
        %904 = vmatpush2.bf16.msra.mxu0 0
        %905 = vmatprep.subr.bf16.mxu0 0
        %906 = vmatpush2.bf16.msra.mxu0 0
        %907 = vmatprep.subr.bf16.mxu0 0
        %908 = vmatpush2.bf16.msra.mxu0 0
        %909 = vmatprep.subr.bf16.mxu0 0
        %910 = vmatpush2.bf16.msra.mxu0 0
        %911 = vmatprep.subr.bf16.mxu0 0
        %912 = vmatpush2.bf16.msra.mxu0 0
        %913 = vmatprep.subr.bf16.mxu0 0
        %914 = vmatpush2.bf16.msra.mxu0 0
        %915 = vmatprep.subr.bf16.mxu0 0
        %916 = vmatpush2.bf16.msra.mxu0 0
        %917 = vmatprep.subr.bf16.mxu0 0
        %918 = vmatpush2.bf16.msra.mxu0 0
        %919 = vmatprep.mubr.bf16.mxu0 0
        %920 = vmatmul.mubr.bf16.gmra.mxu0 %v855
        %v921 = vpop.f32.mrf.mxu0
        %v922 = vadd.f32 0.0, %v921
        %v923 = vpop.f32.mrf.mxu0
        %v924 = vpop.f32.mrf.mxu0
        %v925 = vadd.f32 0.0, %v924
        %v926 = vpop.f32.mrf.mxu0
        %927 = vmatprep.mubr.bf16.mxu0 0
        %928 = vmatmul.mubr.bf16.gmra.mxu0 %v856
        %v929 = vpop.f32.mrf.mxu0
        %v930 = vadd.f32 0.0, %v929
        %v931 = vpop.f32.mrf.mxu0
        %v932 = vpop.f32.mrf.mxu0
        %v933 = vadd.f32 0.0, %v932
        %v934 = vpop.f32.mrf.mxu0
        %935 = vmatprep.mubr.bf16.mxu0 0
        %936 = vmatmul.mubr.bf16.gmra.mxu0 %v857
        %v937 = vpop.f32.mrf.mxu0
        %v938 = vadd.f32 0.0, %v937
        %v939 = vpop.f32.mrf.mxu0
        %v940 = vpop.f32.mrf.mxu0
        %v941 = vadd.f32 0.0, %v940
        %v942 = vpop.f32.mrf.mxu0
        %943 = vmatprep.mubr.bf16.mxu0 0
        %944 = vmatmul.mubr.bf16.gmra.mxu0 %v858
        %v945 = vpop.f32.mrf.mxu0
        %v946 = vadd.f32 0.0, %v945
        %v947 = vpop.f32.mrf.mxu0
        %v948 = vpop.f32.mrf.mxu0
        %v949 = vadd.f32 0.0, %v948
        %v950 = vpop.f32.mrf.mxu0
        %951 = vmatprep.mubr.bf16.mxu0 0
        %952 = vmatmul.mubr.bf16.gmra.mxu0 %v859
        %v953 = vpop.f32.mrf.mxu0
        %v954 = vadd.f32 0.0, %v953
        %v955 = vpop.f32.mrf.mxu0
        %v956 = vpop.f32.mrf.mxu0
        %v957 = vadd.f32 0.0, %v956
        %v958 = vpop.f32.mrf.mxu0
        %959 = vmatprep.mubr.bf16.mxu0 0
        %960 = vmatmul.mubr.bf16.gmra.mxu0 %v860
        %v961 = vpop.f32.mrf.mxu0
        %v962 = vadd.f32 0.0, %v961
        %v963 = vpop.f32.mrf.mxu0
        %v964 = vpop.f32.mrf.mxu0
        %v965 = vadd.f32 0.0, %v964
        %v966 = vpop.f32.mrf.mxu0
        %967 = vmatprep.mubr.bf16.mxu0 0
        %968 = vmatmul.mubr.bf16.gmra.mxu0 %v861
        %v969 = vpop.f32.mrf.mxu0
        %v970 = vadd.f32 0.0, %v969
        %v971 = vpop.f32.mrf.mxu0
        %v972 = vpop.f32.mrf.mxu0
        %v973 = vadd.f32 0.0, %v972
        %v974 = vpop.f32.mrf.mxu0
        %975 = vmatprep.mubr.bf16.mxu0 0
        %976 = vmatmul.mubr.bf16.gmra.mxu0 %v862
        %v977 = vpop.f32.mrf.mxu0
        %v978 = vadd.f32 0.0, %v977
        %v979 = vpop.f32.mrf.mxu0
        %v980 = vpop.f32.mrf.mxu0
        %v981 = vadd.f32 0.0, %v980
        %v982 = vpop.f32.mrf.mxu0
        %983 = vdwg.mxu0
        %v984 = vpack.c.bf16 %v925, %v922
        %v985 = vpack.c.bf16 %v933, %v930
        %v986 = vpack.c.bf16 %v941, %v938
        %v987 = vpack.c.bf16 %v949, %v946
        %v988 = vpack.c.bf16 %v957, %v954
        %v989 = vpack.c.bf16 %v965, %v962
        %v990 = vpack.c.bf16 %v973, %v970
        %v991 = vpack.c.bf16 %v981, %v978
        %s992 = smul.addr %s27, 4
        %s993 = scalar_lea.vmem %s4, %s992
        %v994 = vld [vmem:[%s993] sm:$0xf]
        %v996 = vsel %vm549, %v984, 0
        %v999 = vsel %vm549, %v985, 0
        %v1002 = vsel %vm549, %v986, 0
        %v1005 = vsel %vm549, %v987, 0
        %v1008 = vsel %vm549, %v988, 0
        %v1011 = vsel %vm549, %v989, 0
        %v1014 = vsel %vm549, %v990, 0
        %v1017 = vsel %vm549, %v991, 0
        %vm1019 = vcmask 1043456
        %v1021 = vsel %vm1019, %v994, 0
        %1023 = vmatprep.subr.bf16.mxu0 0
        %1024 = vmatpush1.bf16.msra.mxu0 0
        %1025 = vmatprep.subr.bf16.mxu0 0
        %1026 = vmatpush1.bf16.msra.mxu0 0
        %1027 = vmatprep.subr.bf16.mxu0 0
        %1028 = vmatpush1.bf16.msra.mxu0 0
        %1029 = vmatprep.subr.bf16.mxu0 0
        %1030 = vmatpush1.bf16.msra.mxu0 0
        %1031 = vmatprep.subr.bf16.mxu0 0
        %1032 = vmatpush1.bf16.msra.mxu0 0
        %1033 = vmatprep.subr.bf16.mxu0 0
        %1034 = vmatpush1.bf16.msra.mxu0 0
        %1035 = vmatprep.subr.bf16.mxu0 0
        %1036 = vmatpush1.bf16.msra.mxu0 0
        %1037 = vmatprep.subr.bf16.mxu0 0
        %1038 = vmatpush1.bf16.msra.mxu0 %v1021
        %1039 = vmatprep.subr.bf16.mxu0 0
        %1040 = vmatpush2.bf16.msra.mxu0 0
        %1041 = vmatprep.subr.bf16.mxu0 0
        %1042 = vmatpush2.bf16.msra.mxu0 0
        %1043 = vmatprep.subr.bf16.mxu0 0
        %1044 = vmatpush2.bf16.msra.mxu0 0
        %1045 = vmatprep.subr.bf16.mxu0 0
        %1046 = vmatpush2.bf16.msra.mxu0 0
        %1047 = vmatprep.subr.bf16.mxu0 0
        %1048 = vmatpush2.bf16.msra.mxu0 0
        %1049 = vmatprep.subr.bf16.mxu0 0
        %1050 = vmatpush2.bf16.msra.mxu0 0
        %1051 = vmatprep.subr.bf16.mxu0 0
        %1052 = vmatpush2.bf16.msra.mxu0 0
        %1053 = vmatprep.subr.bf16.mxu0 0
        %1054 = vmatpush2.bf16.msra.mxu0 0
        %1055 = vmatprep.mubr.bf16.mxu0 0
        %1056 = vmatmul.mubr.bf16.gmra.mxu0 %v996
        %v1057 = vpop.f32.mrf.mxu0
        %v1058 = vadd.f32 0.0, %v1057
        %v1059 = vpop.f32.mrf.mxu0
        %v1060 = vpop.f32.mrf.mxu0
        %v1061 = vadd.f32 0.0, %v1060
        %v1062 = vpop.f32.mrf.mxu0
        %1063 = vmatprep.mubr.bf16.mxu0 0
        %1064 = vmatmul.mubr.bf16.gmra.mxu0 %v999
        %v1065 = vpop.f32.mrf.mxu0
        %v1066 = vadd.f32 0.0, %v1065
        %v1067 = vpop.f32.mrf.mxu0
        %v1068 = vpop.f32.mrf.mxu0
        %v1069 = vadd.f32 0.0, %v1068
        %v1070 = vpop.f32.mrf.mxu0
        %1071 = vmatprep.mubr.bf16.mxu0 0
        %1072 = vmatmul.mubr.bf16.gmra.mxu0 %v1002
        %v1073 = vpop.f32.mrf.mxu0
        %v1074 = vadd.f32 0.0, %v1073
        %v1075 = vpop.f32.mrf.mxu0
        %v1076 = vpop.f32.mrf.mxu0
        %v1077 = vadd.f32 0.0, %v1076
        %v1078 = vpop.f32.mrf.mxu0
        %1079 = vmatprep.mubr.bf16.mxu0 0
        %1080 = vmatmul.mubr.bf16.gmra.mxu0 %v1005
        %v1081 = vpop.f32.mrf.mxu0
        %v1082 = vadd.f32 0.0, %v1081
        %v1083 = vpop.f32.mrf.mxu0
        %v1084 = vpop.f32.mrf.mxu0
        %v1085 = vadd.f32 0.0, %v1084
        %v1086 = vpop.f32.mrf.mxu0
        %1087 = vmatprep.mubr.bf16.mxu0 0
        %1088 = vmatmul.mubr.bf16.gmra.mxu0 %v1008
        %v1089 = vpop.f32.mrf.mxu0
        %v1090 = vadd.f32 0.0, %v1089
        %v1091 = vpop.f32.mrf.mxu0
        %v1092 = vpop.f32.mrf.mxu0
        %v1093 = vadd.f32 0.0, %v1092
        %v1094 = vpop.f32.mrf.mxu0
        %1095 = vmatprep.mubr.bf16.mxu0 0
        %1096 = vmatmul.mubr.bf16.gmra.mxu0 %v1011
        %v1097 = vpop.f32.mrf.mxu0
        %v1098 = vadd.f32 0.0, %v1097
        %v1099 = vpop.f32.mrf.mxu0
        %v1100 = vpop.f32.mrf.mxu0
        %v1101 = vadd.f32 0.0, %v1100
        %v1102 = vpop.f32.mrf.mxu0
        %1103 = vmatprep.mubr.bf16.mxu0 0
        %1104 = vmatmul.mubr.bf16.gmra.mxu0 %v1014
        %v1105 = vpop.f32.mrf.mxu0
        %v1106 = vadd.f32 0.0, %v1105
        %v1107 = vpop.f32.mrf.mxu0
        %v1108 = vpop.f32.mrf.mxu0
        %v1109 = vadd.f32 0.0, %v1108
        %v1110 = vpop.f32.mrf.mxu0
        %1111 = vmatprep.mubr.bf16.mxu0 0
        %1112 = vmatmul.mubr.bf16.gmra.mxu0 %v1017
        %v1113 = vpop.f32.mrf.mxu0
        %v1114 = vadd.f32 0.0, %v1113
        %v1115 = vpop.f32.mrf.mxu0
        %v1116 = vpop.f32.mrf.mxu0
        %v1117 = vadd.f32 0.0, %v1116
        %v1118 = vpop.f32.mrf.mxu0
        %1119 = vdwg.mxu0
        %p1120 = scmp.eq.s32.totalorder %s27, 0
        // Predicated region
        $region45: #{tpu_custom_call.1} parent=43 // pred_check
          %p1121 = pneg %p1120
        $region46: #{tpu_custom_call.1} parent=43 // pred_check_branch
          %1123 = sbr.rel (%p1121) target = $region48
        $region47: #{tpu_custom_call.1} parent=43 // pred_region
          %1124 = vst.msk [vmem:[%s303] sm:$0xff] %vm388, %v1058
          %1125 = vst.msk [vmem:[%s303 + $0x8] sm:$0xff] %vm388, %v1061
          %1126 = vst.msk [vmem:[%s303 + $0x10] sm:$0xff] %vm388, %v1066
          %1127 = vst.msk [vmem:[%s303 + $0x18] sm:$0xff] %vm388, %v1069
          %1128 = vst.msk [vmem:[%s303 + $0x20] sm:$0xff] %vm388, %v1074
          %1129 = vst.msk [vmem:[%s303 + $0x28] sm:$0xff] %vm388, %v1077
          %1130 = vst.msk [vmem:[%s303 + $0x30] sm:$0xff] %vm388, %v1082
          %1131 = vst.msk [vmem:[%s303 + $0x38] sm:$0xff] %vm388, %v1085
          %1132 = vst.msk [vmem:[%s303 + $0x40] sm:$0xff] %vm388, %v1090
          %1133 = vst.msk [vmem:[%s303 + $0x48] sm:$0xff] %vm388, %v1093
          %1134 = vst.msk [vmem:[%s303 + $0x50] sm:$0xff] %vm388, %v1098
          %1135 = vst.msk [vmem:[%s303 + $0x58] sm:$0xff] %vm388, %v1101
          %1136 = vst.msk [vmem:[%s303 + $0x60] sm:$0xff] %vm388, %v1106
          %1137 = vst.msk [vmem:[%s303 + $0x68] sm:$0xff] %vm388, %v1109
          %1138 = vst.msk [vmem:[%s303 + $0x70] sm:$0xff] %vm388, %v1114
          %1139 = vst.msk [vmem:[%s303 + $0x78] sm:$0xff] %vm388, %v1117
        $region48: #{tpu_custom_call.1} parent=43 // pred_fallthru
          _
        %p1140 = scmp.ne.s32.totalorder %s27, 0
        // Predicated region
        $region49: #{tpu_custom_call.1} parent=43 // pred_check
          %p1141 = pneg %p1140
        $region50: #{tpu_custom_call.1} parent=43 // pred_check_branch
          %1143 = sbr.rel (%p1141) target = $region52
        $region51: #{tpu_custom_call.1} parent=43 // pred_region
          %v1144 = vld [vmem:[%s303] sm:$0xff]
          %v1145 = vld [vmem:[%s303 + $0x8] sm:$0xff]
          %v1146 = vld [vmem:[%s303 + $0x10] sm:$0xff]
          %v1147 = vld [vmem:[%s303 + $0x18] sm:$0xff]
          %v1148 = vld [vmem:[%s303 + $0x20] sm:$0xff]
          %v1149 = vld [vmem:[%s303 + $0x28] sm:$0xff]
          %v1150 = vld [vmem:[%s303 + $0x30] sm:$0xff]
          %v1151 = vld [vmem:[%s303 + $0x38] sm:$0xff]
          %v1152 = vld [vmem:[%s303 + $0x40] sm:$0xff]
          %v1153 = vld [vmem:[%s303 + $0x48] sm:$0xff]
          %v1154 = vld [vmem:[%s303 + $0x50] sm:$0xff]
          %v1155 = vld [vmem:[%s303 + $0x58] sm:$0xff]
          %v1156 = vld [vmem:[%s303 + $0x60] sm:$0xff]
          %v1157 = vld [vmem:[%s303 + $0x68] sm:$0xff]
          %v1158 = vld [vmem:[%s303 + $0x70] sm:$0xff]
          %v1159 = vld [vmem:[%s303 + $0x78] sm:$0xff]
          %v1160 = vadd.f32 %v1144, %v1058
          %v1161 = vadd.f32 %v1145, %v1061
          %v1162 = vadd.f32 %v1146, %v1066
          %v1163 = vadd.f32 %v1147, %v1069
          %v1164 = vadd.f32 %v1148, %v1074
          %v1165 = vadd.f32 %v1149, %v1077
          %v1166 = vadd.f32 %v1150, %v1082
          %v1167 = vadd.f32 %v1151, %v1085
          %v1168 = vadd.f32 %v1152, %v1090
          %v1169 = vadd.f32 %v1153, %v1093
          %v1170 = vadd.f32 %v1154, %v1098
          %v1171 = vadd.f32 %v1155, %v1101
          %v1172 = vadd.f32 %v1156, %v1106
          %v1173 = vadd.f32 %v1157, %v1109
          %v1174 = vadd.f32 %v1158, %v1114
          %v1175 = vadd.f32 %v1159, %v1117
          %1176 = vst.msk [vmem:[%s303] sm:$0xff] %vm388, %v1160
          %1177 = vst.msk [vmem:[%s303 + $0x8] sm:$0xff] %vm388, %v1161
          %1178 = vst.msk [vmem:[%s303 + $0x10] sm:$0xff] %vm388, %v1162
          %1179 = vst.msk [vmem:[%s303 + $0x18] sm:$0xff] %vm388, %v1163
          %1180 = vst.msk [vmem:[%s303 + $0x20] sm:$0xff] %vm388, %v1164
          %1181 = vst.msk [vmem:[%s303 + $0x28] sm:$0xff] %vm388, %v1165
          %1182 = vst.msk [vmem:[%s303 + $0x30] sm:$0xff] %vm388, %v1166
          %1183 = vst.msk [vmem:[%s303 + $0x38] sm:$0xff] %vm388, %v1167
          %1184 = vst.msk [vmem:[%s303 + $0x40] sm:$0xff] %vm388, %v1168
          %1185 = vst.msk [vmem:[%s303 + $0x48] sm:$0xff] %vm388, %v1169
          %1186 = vst.msk [vmem:[%s303 + $0x50] sm:$0xff] %vm388, %v1170
          %1187 = vst.msk [vmem:[%s303 + $0x58] sm:$0xff] %vm388, %v1171
          %1188 = vst.msk [vmem:[%s303 + $0x60] sm:$0xff] %vm388, %v1172
          %1189 = vst.msk [vmem:[%s303 + $0x68] sm:$0xff] %vm388, %v1173
          %1190 = vst.msk [vmem:[%s303 + $0x70] sm:$0xff] %vm388, %v1174
          %1191 = vst.msk [vmem:[%s303 + $0x78] sm:$0xff] %vm388, %v1175
        $region52: #{tpu_custom_call.1} parent=43 // pred_fallthru
          _
        %p1192 = scmp.eq.s32.totalorder %s27, 3
        // Predicated region
        $region53: #{tpu_custom_call.1} parent=43 // pred_check
          %p1193 = pneg %p1192
        $region54: #{tpu_custom_call.1} parent=43 // pred_check_branch
          %1195 = sbr.rel (%p1193) target = $region56
        $region55: #{tpu_custom_call.1} parent=43 // pred_region
          %v1196 = vld [vmem:[%s303] sm:$0xff]
          %v1197 = vld [vmem:[%s303 + $0x8] sm:$0xff]
          %v1198 = vld [vmem:[%s303 + $0x10] sm:$0xff]
          %v1199 = vld [vmem:[%s303 + $0x18] sm:$0xff]
          %v1200 = vld [vmem:[%s303 + $0x20] sm:$0xff]
          %v1201 = vld [vmem:[%s303 + $0x28] sm:$0xff]
          %v1202 = vld [vmem:[%s303 + $0x30] sm:$0xff]
          %v1203 = vld [vmem:[%s303 + $0x38] sm:$0xff]
          %v1204 = vld [vmem:[%s303 + $0x40] sm:$0xff]
          %v1205 = vld [vmem:[%s303 + $0x48] sm:$0xff]
          %v1206 = vld [vmem:[%s303 + $0x50] sm:$0xff]
          %v1207 = vld [vmem:[%s303 + $0x58] sm:$0xff]
          %v1208 = vld [vmem:[%s303 + $0x60] sm:$0xff]
          %v1209 = vld [vmem:[%s303 + $0x68] sm:$0xff]
          %v1210 = vld [vmem:[%s303 + $0x70] sm:$0xff]
          %v1211 = vld [vmem:[%s303 + $0x78] sm:$0xff]
          %v1212 = vld [vmem:[%s5] sm:$0x1]
          %v1214 = vlaneseq
          %v1215 = vshrl.u32 %v1214, 7
          %v1216 = vsub.s32 0, %v1215
          %v1217 = vrot.slane %v1212, %v1216
          %v1219 = vadd.f32 %v1196, %v1217
          %v1220 = vadd.f32 %v1197, %v1217
          %v1221 = vadd.f32 %v1198, %v1217
          %v1222 = vadd.f32 %v1199, %v1217
          %v1223 = vadd.f32 %v1200, %v1217
          %v1224 = vadd.f32 %v1201, %v1217
          %v1225 = vadd.f32 %v1202, %v1217
          %v1226 = vadd.f32 %v1203, %v1217
          %v1227 = vadd.f32 %v1204, %v1217
          %v1228 = vadd.f32 %v1205, %v1217
          %v1229 = vadd.f32 %v1206, %v1217
          %v1230 = vadd.f32 %v1207, %v1217
          %v1231 = vadd.f32 %v1208, %v1217
          %v1232 = vadd.f32 %v1209, %v1217
          %v1233 = vadd.f32 %v1210, %v1217
          %v1234 = vadd.f32 %v1211, %v1217
          %1235 = vst.msk [vmem:[%s303] sm:$0xff] %vm388, %v1219
          %1236 = vst.msk [vmem:[%s303 + $0x8] sm:$0xff] %vm388, %v1220
          %1237 = vst.msk [vmem:[%s303 + $0x10] sm:$0xff] %vm388, %v1221
          %1238 = vst.msk [vmem:[%s303 + $0x18] sm:$0xff] %vm388, %v1222
          %1239 = vst.msk [vmem:[%s303 + $0x20] sm:$0xff] %vm388, %v1223
          %1240 = vst.msk [vmem:[%s303 + $0x28] sm:$0xff] %vm388, %v1224
          %1241 = vst.msk [vmem:[%s303 + $0x30] sm:$0xff] %vm388, %v1225
          %1242 = vst.msk [vmem:[%s303 + $0x38] sm:$0xff] %vm388, %v1226
          %1243 = vst.msk [vmem:[%s303 + $0x40] sm:$0xff] %vm388, %v1227
          %1244 = vst.msk [vmem:[%s303 + $0x48] sm:$0xff] %vm388, %v1228
          %1245 = vst.msk [vmem:[%s303 + $0x50] sm:$0xff] %vm388, %v1229
          %1246 = vst.msk [vmem:[%s303 + $0x58] sm:$0xff] %vm388, %v1230
          %1247 = vst.msk [vmem:[%s303 + $0x60] sm:$0xff] %vm388, %v1231
          %1248 = vst.msk [vmem:[%s303 + $0x68] sm:$0xff] %vm388, %v1232
          %1249 = vst.msk [vmem:[%s303 + $0x70] sm:$0xff] %vm388, %v1233
          %1250 = vst.msk [vmem:[%s303 + $0x78] sm:$0xff] %vm388, %v1234
        $region56: #{tpu_custom_call.1} parent=43 // pred_fallthru
          _
        %p1251 = scmp.lt.s32.totalorder %s26, 1
        %s1252 = scalar_select %p1251, %s26, 1
        %s1253 = smul.addr %s1252, 16
        %s1254 = smul.addr %s1253, 8
        %s1255 = scalar_lea.vmem %s6, %s1254
        %s1256 = sand.u32 %s201, 1
        %s1257 = scalar_lea.sflag [#allocation3], %s1256
        %s1258 = sand.u32 %s201, 1
        %s1259 = smul.addr %s1258, 128
        %s1260 = scalar_lea.vmem [#allocation2], %s1259
        // Predicated region
        $region57: #{tpu_custom_call.1} parent=43 // pred_check
          %p1261 = pneg %p183
        $region58: #{tpu_custom_call.1} parent=43 // pred_check_branch
          %1263 = sbr.rel (%p1261) target = $region60
        $region59: #{tpu_custom_call.1} parent=43 // pred_region
          _
        $region60: #{tpu_custom_call.1} parent=43 // pred_fallthru
          _
        // Predicated region
        $region61: #{tpu_custom_call.1} parent=43 // pred_check
          %p1264 = pneg %p211
        $region62: #{tpu_custom_call.1} parent=43 // pred_check_branch
          %1266 = sbr.rel (%p1264) target = $region64
        $region63: #{tpu_custom_call.1} parent=43 // pred_region
          %s1268 = ssub.s32 2048, 2048
          %1269 = vsyncadd %s1257, %s1268
          %s1270 = smul.addr %s27, 16
          %s1271 = smul.addr %s26, 64
          %s1272 = sadd.s32 %s1270, %s1271
          %s1273 = smul.addr %s1272, 128
          %s1274 = scalar_lea.hbm %s7, %s1273
          %s1275 = sshll.u32 %s1260, 4
          %s1276 = int_to_ptr.vmem [resolvable:$true] %s1275
          %1281 = dma.vmem_to_hbm [thread:$0]  %s1276, 2048, %s1274, %s1257, 128, 128, 8
        $region64: #{tpu_custom_call.1} parent=43 // pred_fallthru
          _
      $region44: #{tpu_custom_call.1} parent=5 // pred_fallthru
        _
      %p1282 = scmp.le.s32.totalorder 2, %s17
      // Predicated region
      $region65: #{tpu_custom_call.1} parent=5 // pred_check
        %p1283 = pneg %p1282
      $region66: #{tpu_custom_call.1} parent=5 // pred_check_branch
        %1285 = sbr.rel (%p1283) target = $region68
      $region67: #{tpu_custom_call.1} parent=5 // pred_region
        %s1286 = ssub.s32 %s17, 2
        // Predicated region
        $region69: #{tpu_custom_call.1} parent=67 // pred_check
          %p1287 = pneg %p189
        $region70: #{tpu_custom_call.1} parent=67 // pred_check_branch
          %1289 = sbr.rel (%p1287) target = $region72
        $region71: #{tpu_custom_call.1} parent=67 // pred_region
          %p1290 = scmp.lt.s32.totalorder %s28, 1
          %s1291 = scalar_select %p1290, %s28, 1
          %s1292 = smul.addr %s1291, 16
          %s1293 = smul.addr %s1292, 8
          %s1294 = scalar_lea.vmem %s6, %s1293
        $region72: #{tpu_custom_call.1} parent=67 // pred_fallthru
          _
        // Predicated region
        $region73: #{tpu_custom_call.1} parent=67 // pred_check
          %p1295 = pneg %p217
        $region74: #{tpu_custom_call.1} parent=67 // pred_check_branch
          %1297 = sbr.rel (%p1295) target = $region76
        $region75: #{tpu_custom_call.1} parent=67 // pred_region
          %s1298 = sand.u32 %s202, 1
          %s1299 = scalar_lea.sflag [#allocation3], %s1298
          %s1300 = sand.u32 %s202, 1
          %s1301 = smul.addr %s1300, 128
          %s1302 = scalar_lea.vmem [#allocation2], %s1301
          %1303 = dma.done %s1299, 2048
        $region76: #{tpu_custom_call.1} parent=67 // pred_fallthru
          _
      $region68: #{tpu_custom_call.1} parent=5 // pred_fallthru
        _
    $region6: #{tpu_custom_call.1} parent=1 // loop_footer
      %s21 = sadd.s32 1, %s17
    $region7: #{tpu_custom_call.1} parent=1 // loop_footer_branch
      %16 = sbr.rel target = $region3
    $region8: #{tpu_custom_call.1} parent=1 // loop_exit
      _
    %1304 = vsyncpa [#allocation3], 1
    %s1305 = scalar_lea.sflag [#allocation3], 1
    %1306 = vsyncpa %s1305, 1

</llo_original>
